<compile_context>
chip_gen: v7x
topology: tpu7x:2x2x1
jax: 0.10.0
libtpu: 0.0.40
codegen_flags: <defaults>
</compile_context>

<pallas_src>
import math
import jax
import jax.numpy as jnp
from jax.experimental import pallas as pl
from jax.experimental.pallas import tpu as pltpu


def _silu(v):
    return v * jax.nn.sigmoid(v)


def toyz_kernel(t_ref, freqs_ref, phase_ref, x_ref,
                wt1_ref, bt1_ref, wt2_ref, bt2_ref,
                wx1_ref, bx1_ref, wx2_ref, bx2_ref, wx3_ref, bx3_ref,
                wo1_ref, bo1_ref, wo2_ref, bo2_ref,
                out_ref):
    f32 = jnp.float32
    mm_dtype = wt1_ref.dtype        # f32, or bf16 when the wrapper casts weights

    # ---- timestep embedding as a single lane-dense cos:
    #        lanes [0, half)        -> cos(t * f)
    #        lanes [half, 2*half)   -> cos(t * f - pi/2) = sin(t * f)
    args = t_ref[...] * freqs_ref[...] - phase_ref[...]     # (tn, T_EMB) f32
    t_emb = jnp.cos(args)

    # ---- t_module: Linear -> SiLU -> Linear (MXU, f32 accumulation)
    h_t = jnp.dot(t_emb.astype(mm_dtype), wt1_ref[...],
                  preferred_element_type=f32) + bt1_ref[...]
    h_t = _silu(h_t)
    t_out = jnp.dot(h_t.astype(mm_dtype), wt2_ref[...],
                    preferred_element_type=f32) + bt2_ref[...]

    # ---- x_module layer 1 on the VPU: contraction depth = data_dim (tiny),
    #      so a matmul would waste the systolic array.
    x = x_ref[...].astype(f32)                   # (tn, data_dim)
    wx1 = wx1_ref[...].astype(f32)               # (data_dim, hid)
    h = x[:, 0:1] * wx1[0:1, :]
    for k in range(1, x.shape[1]):               # static, tiny unrolled loop
        h = h + x[:, k:k + 1] * wx1[k:k + 1, :]
    h = _silu(h + bx1_ref[...])

    # ---- x_module layers 2-3 (MXU)
    h = jnp.dot(h.astype(mm_dtype), wx2_ref[...],
                preferred_element_type=f32) + bx2_ref[...]
    h = _silu(h)
    x_out = jnp.dot(h.astype(mm_dtype), wx3_ref[...],
                    preferred_element_type=f32) + bx3_ref[...]

    # ---- out_module on (x_out + t_out): Linear -> SiLU -> Linear
    h = x_out + t_out
    h = jnp.dot(h.astype(mm_dtype), wo1_ref[...],
                preferred_element_type=f32) + bo1_ref[...]
    h = _silu(h)
    # wo2/bo2 are zero-padded to 128 output lanes in the wrapper: full-width,
    # unmasked store (no vst.msk partial stores for a 2-lane output).
    out = jnp.dot(h.astype(mm_dtype), wo2_ref[...],
                  preferred_element_type=f32) + bo2_ref[...]
    out_ref[...] = out.astype(out_ref.dtype)


def init_params(key, data_dim=2, hidden_dim=128, time_embed_dim=128):
    """Deterministic synthetic params. Weights stored as (in, out); biases (1, out)."""
    dims = [
        ("wt1", (time_embed_dim, hidden_dim)), ("wt2", (hidden_dim, hidden_dim)),
        ("wx1", (data_dim, hidden_dim)), ("wx2", (hidden_dim, hidden_dim)),
        ("wx3", (hidden_dim, hidden_dim)),
        ("wo1", (hidden_dim, hidden_dim)), ("wo2", (hidden_dim, data_dim)),
    ]
    params = {}
    keys = jax.random.split(key, 2 * len(dims))
    for i, (name, shape) in enumerate(dims):
        params[name] = 0.05 * jax.random.normal(keys[2 * i], shape, dtype=jnp.float32)
        params["b" + name[1:]] = 0.01 * jax.random.normal(
            keys[2 * i + 1], (1, shape[1]), dtype=jnp.float32)
    return params


def toyz_forward(x, t, params, *, time_embed_dim=128, data_dim=2,
                 tile_n=1024, use_bf16=False):
    N = x.shape[0]
    hid = params["wt2"].shape[0]
    half = time_embed_dim // 2

    # --- embedding constants (built once outside the kernel)
    base = jnp.exp(-math.log(10000.0) * jnp.arange(half, dtype=jnp.float32) / half)
    freqs_full = jnp.concatenate([base, base]).reshape(1, time_embed_dim)
    phase = jnp.concatenate(
        [jnp.zeros((half,), jnp.float32),
         jnp.full((half,), 0.5 * math.pi, jnp.float32)]).reshape(1, time_embed_dim)

    # --- batch tile: multiple of 8 sublanes, capped by tile_n; pad N up to it
    tn = max(8, min(tile_n, -(-N // 8) * 8))
    tn = -(-tn // 8) * 8
    n_pad = -(-N // tn) * tn

    x_p = jnp.pad(x.astype(jnp.float32), ((0, n_pad - N), (0, 0)))
    t_p = jnp.pad(t.astype(jnp.float32).reshape(N, 1), ((0, n_pad - N), (0, 0)))

    # --- lane-dense output: pad final projection to a multiple of 128 lanes
    out_lanes = -(-data_dim // 128) * 128
    wo2 = jnp.pad(params["wo2"], ((0, 0), (0, out_lanes - data_dim)))
    bo2 = jnp.pad(params["bo2"], ((0, 0), (0, out_lanes - data_dim)))

    mm_dtype = jnp.bfloat16 if use_bf16 else jnp.float32
    cast = lambda w: w.astype(mm_dtype)

    args = (
        t_p, freqs_full, phase, x_p,
        cast(params["wt1"]), params["bt1"], cast(params["wt2"]), params["bt2"],
        params["wx1"], params["bx1"],               # VPU layer stays f32
        cast(params["wx2"]), params["bx2"], cast(params["wx3"]), params["bx3"],
        cast(params["wo1"]), params["bo1"], cast(wo2), bo2,
    )

    def batch_spec(feat):
        return pl.BlockSpec((tn, feat), lambda i: (i, 0))

    def const_spec(a):
        return pl.BlockSpec(a.shape, lambda i: (0, 0))   # weights pinned in VMEM

    in_specs = [
        batch_spec(1),            # t
        const_spec(freqs_full),   # freqs
        const_spec(phase),        # phase
        batch_spec(data_dim),     # x
    ] + [const_spec(a) for a in args[4:]]

    out_specs = pl.BlockSpec((tn, out_lanes), lambda i: (i, 0))

    n_silu = 4
    cost = pl.CostEstimate(
        flops=2 * n_pad * (5 * hid * hid + hid * out_lanes + data_dim * hid),
        transcendentals=n_pad * (time_embed_dim + n_silu * hid),
        bytes_accessed=(n_pad * (data_dim + 1 + out_lanes) * 4
                        + sum(int(a.size) * a.dtype.itemsize for a in args[4:])),
    )

    out = pl.pallas_call(
        toyz_kernel,
        out_shape=jax.ShapeDtypeStruct((n_pad, out_lanes), jnp.float32),
        grid=(n_pad // tn,),
        in_specs=in_specs,
        out_specs=out_specs,
        compiler_params=pltpu.CompilerParams(
            dimension_semantics=("parallel",)),
        cost_estimate=cost,
    )(*args)

    return out[:N, :data_dim]


def toyz_reference(x, t, params, *, time_embed_dim=128):
    """Pure-JAX reference mirroring the PyTorch forward."""
    half = time_embed_dim // 2
    freqs = jnp.exp(-math.log(10000.0) * jnp.arange(half, dtype=jnp.float32) / half)
    args = t.astype(jnp.float32)[:, None] * freqs[None, :]
    t_emb = jnp.concatenate([jnp.cos(args), jnp.sin(args)], axis=-1)

    silu = lambda v: v * jax.nn.sigmoid(v)
    h_t = silu(t_emb @ params["wt1"] + params["bt1"])
    t_out = h_t @ params["wt2"] + params["bt2"]

    h = silu(x @ params["wx1"] + params["bx1"])
    h = silu(h @ params["wx2"] + params["bx2"])
    x_out = h @ params["wx3"] + params["bx3"]

    h = silu((x_out + t_out) @ params["wo1"] + params["bo1"])
    return h @ params["wo2"] + params["bo2"]


if __name__ == "__main__":
    DATA_DIM, HID, T_EMB = 2, 128, 128
    N = 200        # exercises padding (200 -> 256) and a multi-step batch grid
    TILE_N = 64    # small tile so the test actually runs several grid steps

    key = jax.random.PRNGKey(0)
    kx, kt, kp = jax.random.split(key, 3)
    x = jax.random.normal(kx, (N, DATA_DIM), dtype=jnp.float32)
    t = jax.random.uniform(kt, (N,), dtype=jnp.float32, minval=0.0, maxval=1000.0)
    params = init_params(kp, DATA_DIM, HID, T_EMB)

    out = toyz_forward(x, t, params, time_embed_dim=T_EMB, data_dim=DATA_DIM,
                       tile_n=TILE_N)
    out = jax.block_until_ready(out)

    ref = toyz_reference(x, t, params, time_embed_dim=T_EMB)
    assert out.shape == (N, DATA_DIM)
    # slight slack vs 1e-4: the phase-offset cos(t*f - pi/2) takes a different
    # range-reduction path than the reference's sin(t*f) at args up to ~1000.
    assert jnp.allclose(out, ref, atol=2e-4, rtol=2e-4)

    # bf16 matmul fast path (v6e/v7x) — exercise compile + run; f32 embedding
    # and accumulation are preserved so accuracy stays close to the f32 path.
    out_bf16 = jax.block_until_ready(
        toyz_forward(x, t, params, time_embed_dim=T_EMB, data_dim=DATA_DIM,
                     tile_n=TILE_N, use_bf16=True))
    assert out_bf16.shape == (N, DATA_DIM)

    print("KERNEL_OK")
</pallas_src>

<mosaic_0001>
module attributes {stable_mosaic.version = 11 : i64} {
  func.func @toyz_kernel(%arg0: i32, %arg1: memref<64x1xf32, #tpu.memory_space<vmem>>, %arg2: memref<1x128xf32, #tpu.memory_space<vmem>>, %arg3: memref<1x128xf32, #tpu.memory_space<vmem>>, %arg4: memref<64x2xf32, #tpu.memory_space<vmem>>, %arg5: memref<128x128xf32, #tpu.memory_space<vmem>>, %arg6: memref<1x128xf32, #tpu.memory_space<vmem>>, %arg7: memref<128x128xf32, #tpu.memory_space<vmem>>, %arg8: memref<1x128xf32, #tpu.memory_space<vmem>>, %arg9: memref<2x128xf32, #tpu.memory_space<vmem>>, %arg10: memref<1x128xf32, #tpu.memory_space<vmem>>, %arg11: memref<128x128xf32, #tpu.memory_space<vmem>>, %arg12: memref<1x128xf32, #tpu.memory_space<vmem>>, %arg13: memref<128x128xf32, #tpu.memory_space<vmem>>, %arg14: memref<1x128xf32, #tpu.memory_space<vmem>>, %arg15: memref<128x128xf32, #tpu.memory_space<vmem>>, %arg16: memref<1x128xf32, #tpu.memory_space<vmem>>, %arg17: memref<128x128xf32, #tpu.memory_space<vmem>>, %arg18: memref<1x128xf32, #tpu.memory_space<vmem>>, %arg19: memref<64x128xf32, #tpu.memory_space<vmem>>) attributes {dimension_semantics = [#tpu.dimension_semantics<parallel>], iteration_bounds = array<i64: 4>, scalar_prefetch = 0 : i64, scratch_operands = 0 : i64, tpu.core_type = #tpu.core_type<tc>, window_params = [{transform_indices = @transform_0, window_bounds = array<i64: 64, 1>}, {pipeline_mode = #tpu.pipeline_mode<synchronous>, transform_indices = @transform_1, window_bounds = array<i64: 1, 128>}, {pipeline_mode = #tpu.pipeline_mode<synchronous>, transform_indices = @transform_2, window_bounds = array<i64: 1, 128>}, {transform_indices = @transform_3, window_bounds = array<i64: 64, 2>}, {pipeline_mode = #tpu.pipeline_mode<synchronous>, transform_indices = @transform_4, window_bounds = array<i64: 128, 128>}, {pipeline_mode = #tpu.pipeline_mode<synchronous>, transform_indices = @transform_5, window_bounds = array<i64: 1, 128>}, {pipeline_mode = #tpu.pipeline_mode<synchronous>, transform_indices = @transform_6, window_bounds = array<i64: 128, 128>}, {pipeline_mode = #tpu.pipeline_mode<synchronous>, transform_indices = @transform_7, window_bounds = array<i64: 1, 128>}, {pipeline_mode = #tpu.pipeline_mode<synchronous>, transform_indices = @transform_8, window_bounds = array<i64: 2, 128>}, {pipeline_mode = #tpu.pipeline_mode<synchronous>, transform_indices = @transform_9, window_bounds = array<i64: 1, 128>}, {pipeline_mode = #tpu.pipeline_mode<synchronous>, transform_indices = @transform_10, window_bounds = array<i64: 128, 128>}, {pipeline_mode = #tpu.pipeline_mode<synchronous>, transform_indices = @transform_11, window_bounds = array<i64: 1, 128>}, {pipeline_mode = #tpu.pipeline_mode<synchronous>, transform_indices = @transform_12, window_bounds = array<i64: 128, 128>}, {pipeline_mode = #tpu.pipeline_mode<synchronous>, transform_indices = @transform_13, window_bounds = array<i64: 1, 128>}, {pipeline_mode = #tpu.pipeline_mode<synchronous>, transform_indices = @transform_14, window_bounds = array<i64: 128, 128>}, {pipeline_mode = #tpu.pipeline_mode<synchronous>, transform_indices = @transform_15, window_bounds = array<i64: 1, 128>}, {pipeline_mode = #tpu.pipeline_mode<synchronous>, transform_indices = @transform_16, window_bounds = array<i64: 128, 128>}, {pipeline_mode = #tpu.pipeline_mode<synchronous>, transform_indices = @transform_17, window_bounds = array<i64: 1, 128>}, {transform_indices = @transform_18, window_bounds = array<i64: 64, 128>}]} {
    %c0 = arith.constant 0 : index
    %c0_0 = arith.constant 0 : index
    %0 = vector.load %arg1[%c0, %c0_0] : memref<64x1xf32, #tpu.memory_space<vmem>>, vector<64x1xf32>
    %c0_1 = arith.constant 0 : index
    %c0_2 = arith.constant 0 : index
    %1 = vector.load %arg2[%c0_1, %c0_2] : memref<1x128xf32, #tpu.memory_space<vmem>>, vector<1x128xf32>
    %2 = vector.broadcast %0 : vector<64x1xf32> to vector<64x128xf32>
    %3 = vector.broadcast %1 : vector<1x128xf32> to vector<64x128xf32>
    %4 = arith.mulf %2, %3 : vector<64x128xf32>
    %c0_3 = arith.constant 0 : index
    %c0_4 = arith.constant 0 : index
    %5 = vector.load %arg3[%c0_3, %c0_4] : memref<1x128xf32, #tpu.memory_space<vmem>>, vector<1x128xf32>
    %6 = vector.broadcast %5 : vector<1x128xf32> to vector<64x128xf32>
    %7 = arith.subf %4, %6 : vector<64x128xf32>
    %8 = math.cos %7 : vector<64x128xf32>
    %c0_5 = arith.constant 0 : index
    %c0_6 = arith.constant 0 : index
    %9 = vector.load %arg5[%c0_5, %c0_6] : memref<128x128xf32, #tpu.memory_space<vmem>>, vector<128x128xf32>
    %cst = arith.constant dense<0.000000e+00> : vector<64x128xf32>
    %10 = tpu.matmul %8, %9, %cst {dimension_numbers = #tpu.dot_dimension_numbers<[1], [0], [0], [1], [0, 0, 1, 1], [], []>} : vector<64x128xf32>, vector<128x128xf32>, vector<64x128xf32> -> vector<64x128xf32>
    %c0_7 = arith.constant 0 : index
    %c0_8 = arith.constant 0 : index
    %11 = vector.load %arg6[%c0_7, %c0_8] : memref<1x128xf32, #tpu.memory_space<vmem>>, vector<1x128xf32>
    %12 = vector.broadcast %11 : vector<1x128xf32> to vector<64x128xf32>
    %13 = arith.addf %10, %12 : vector<64x128xf32>
    %14 = arith.negf %13 : vector<64x128xf32>
    %15 = math.exp %14 : vector<64x128xf32>
    %cst_9 = arith.constant 1.000000e+00 : f32
    %16 = vector.broadcast %cst_9 : f32 to vector<64x128xf32>
    %17 = arith.addf %16, %15 : vector<64x128xf32>
    %18 = arith.divf %16, %17 : vector<64x128xf32>
    %19 = arith.mulf %13, %18 : vector<64x128xf32>
    %c0_10 = arith.constant 0 : index
    %c0_11 = arith.constant 0 : index
    %20 = vector.load %arg7[%c0_10, %c0_11] : memref<128x128xf32, #tpu.memory_space<vmem>>, vector<128x128xf32>
    %cst_12 = arith.constant dense<0.000000e+00> : vector<64x128xf32>
    %21 = tpu.matmul %19, %20, %cst_12 {dimension_numbers = #tpu.dot_dimension_numbers<[1], [0], [0], [1], [0, 0, 1, 1], [], []>} : vector<64x128xf32>, vector<128x128xf32>, vector<64x128xf32> -> vector<64x128xf32>
    %c0_13 = arith.constant 0 : index
    %c0_14 = arith.constant 0 : index
    %22 = vector.load %arg8[%c0_13, %c0_14] : memref<1x128xf32, #tpu.memory_space<vmem>>, vector<1x128xf32>
    %23 = vector.broadcast %22 : vector<1x128xf32> to vector<64x128xf32>
    %24 = arith.addf %21, %23 : vector<64x128xf32>
    %c0_15 = arith.constant 0 : index
    %c0_16 = arith.constant 0 : index
    %25 = vector.load %arg4[%c0_15, %c0_16] : memref<64x2xf32, #tpu.memory_space<vmem>>, vector<64x2xf32>
    %c0_17 = arith.constant 0 : index
    %c0_18 = arith.constant 0 : index
    %26 = vector.load %arg9[%c0_17, %c0_18] : memref<2x128xf32, #tpu.memory_space<vmem>>, vector<2x128xf32>
    %27 = vector.extract_strided_slice %25 {offsets = [0, 0], sizes = [64, 1], strides = [1, 1]} : vector<64x2xf32> to vector<64x1xf32>
    %28 = vector.extract_strided_slice %26 {offsets = [0, 0], sizes = [1, 128], strides = [1, 1]} : vector<2x128xf32> to vector<1x128xf32>
    %29 = vector.broadcast %27 : vector<64x1xf32> to vector<64x128xf32>
    %30 = vector.broadcast %28 : vector<1x128xf32> to vector<64x128xf32>
    %31 = arith.mulf %29, %30 : vector<64x128xf32>
    %32 = vector.extract_strided_slice %25 {offsets = [0, 1], sizes = [64, 1], strides = [1, 1]} : vector<64x2xf32> to vector<64x1xf32>
    %33 = vector.extract_strided_slice %26 {offsets = [1, 0], sizes = [1, 128], strides = [1, 1]} : vector<2x128xf32> to vector<1x128xf32>
    %34 = vector.broadcast %32 : vector<64x1xf32> to vector<64x128xf32>
    %35 = vector.broadcast %33 : vector<1x128xf32> to vector<64x128xf32>
    %36 = arith.mulf %34, %35 : vector<64x128xf32>
    %37 = arith.addf %31, %36 : vector<64x128xf32>
    %c0_19 = arith.constant 0 : index
    %c0_20 = arith.constant 0 : index
    %38 = vector.load %arg10[%c0_19, %c0_20] : memref<1x128xf32, #tpu.memory_space<vmem>>, vector<1x128xf32>
    %39 = vector.broadcast %38 : vector<1x128xf32> to vector<64x128xf32>
    %40 = arith.addf %37, %39 : vector<64x128xf32>
    %41 = arith.negf %40 : vector<64x128xf32>
    %42 = math.exp %41 : vector<64x128xf32>
    %cst_21 = arith.constant 1.000000e+00 : f32
    %43 = vector.broadcast %cst_21 : f32 to vector<64x128xf32>
    %44 = arith.addf %43, %42 : vector<64x128xf32>
    %45 = arith.divf %43, %44 : vector<64x128xf32>
    %46 = arith.mulf %40, %45 : vector<64x128xf32>
    %c0_22 = arith.constant 0 : index
    %c0_23 = arith.constant 0 : index
    %47 = vector.load %arg11[%c0_22, %c0_23] : memref<128x128xf32, #tpu.memory_space<vmem>>, vector<128x128xf32>
    %cst_24 = arith.constant dense<0.000000e+00> : vector<64x128xf32>
    %48 = tpu.matmul %46, %47, %cst_24 {dimension_numbers = #tpu.dot_dimension_numbers<[1], [0], [0], [1], [0, 0, 1, 1], [], []>} : vector<64x128xf32>, vector<128x128xf32>, vector<64x128xf32> -> vector<64x128xf32>
    %c0_25 = arith.constant 0 : index
    %c0_26 = arith.constant 0 : index
    %49 = vector.load %arg12[%c0_25, %c0_26] : memref<1x128xf32, #tpu.memory_space<vmem>>, vector<1x128xf32>
    %50 = vector.broadcast %49 : vector<1x128xf32> to vector<64x128xf32>
    %51 = arith.addf %48, %50 : vector<64x128xf32>
    %52 = arith.negf %51 : vector<64x128xf32>
    %53 = math.exp %52 : vector<64x128xf32>
    %cst_27 = arith.constant 1.000000e+00 : f32
    %54 = vector.broadcast %cst_27 : f32 to vector<64x128xf32>
    %55 = arith.addf %54, %53 : vector<64x128xf32>
    %56 = arith.divf %54, %55 : vector<64x128xf32>
    %57 = arith.mulf %51, %56 : vector<64x128xf32>
    %c0_28 = arith.constant 0 : index
    %c0_29 = arith.constant 0 : index
    %58 = vector.load %arg13[%c0_28, %c0_29] : memref<128x128xf32, #tpu.memory_space<vmem>>, vector<128x128xf32>
    %cst_30 = arith.constant dense<0.000000e+00> : vector<64x128xf32>
    %59 = tpu.matmul %57, %58, %cst_30 {dimension_numbers = #tpu.dot_dimension_numbers<[1], [0], [0], [1], [0, 0, 1, 1], [], []>} : vector<64x128xf32>, vector<128x128xf32>, vector<64x128xf32> -> vector<64x128xf32>
    %c0_31 = arith.constant 0 : index
    %c0_32 = arith.constant 0 : index
    %60 = vector.load %arg14[%c0_31, %c0_32] : memref<1x128xf32, #tpu.memory_space<vmem>>, vector<1x128xf32>
    %61 = vector.broadcast %60 : vector<1x128xf32> to vector<64x128xf32>
    %62 = arith.addf %59, %61 : vector<64x128xf32>
    %63 = arith.addf %62, %24 : vector<64x128xf32>
    %c0_33 = arith.constant 0 : index
    %c0_34 = arith.constant 0 : index
    %64 = vector.load %arg15[%c0_33, %c0_34] : memref<128x128xf32, #tpu.memory_space<vmem>>, vector<128x128xf32>
    %cst_35 = arith.constant dense<0.000000e+00> : vector<64x128xf32>
    %65 = tpu.matmul %63, %64, %cst_35 {dimension_numbers = #tpu.dot_dimension_numbers<[1], [0], [0], [1], [0, 0, 1, 1], [], []>} : vector<64x128xf32>, vector<128x128xf32>, vector<64x128xf32> -> vector<64x128xf32>
    %c0_36 = arith.constant 0 : index
    %c0_37 = arith.constant 0 : index
    %66 = vector.load %arg16[%c0_36, %c0_37] : memref<1x128xf32, #tpu.memory_space<vmem>>, vector<1x128xf32>
    %67 = vector.broadcast %66 : vector<1x128xf32> to vector<64x128xf32>
    %68 = arith.addf %65, %67 : vector<64x128xf32>
    %69 = arith.negf %68 : vector<64x128xf32>
    %70 = math.exp %69 : vector<64x128xf32>
    %cst_38 = arith.constant 1.000000e+00 : f32
    %71 = vector.broadcast %cst_38 : f32 to vector<64x128xf32>
    %72 = arith.addf %71, %70 : vector<64x128xf32>
    %73 = arith.divf %71, %72 : vector<64x128xf32>
    %74 = arith.mulf %68, %73 : vector<64x128xf32>
    %c0_39 = arith.constant 0 : index
    %c0_40 = arith.constant 0 : index
    %75 = vector.load %arg17[%c0_39, %c0_40] : memref<128x128xf32, #tpu.memory_space<vmem>>, vector<128x128xf32>
    %cst_41 = arith.constant dense<0.000000e+00> : vector<64x128xf32>
    %76 = tpu.matmul %74, %75, %cst_41 {dimension_numbers = #tpu.dot_dimension_numbers<[1], [0], [0], [1], [0, 0, 1, 1], [], []>} : vector<64x128xf32>, vector<128x128xf32>, vector<64x128xf32> -> vector<64x128xf32>
    %c0_42 = arith.constant 0 : index
    %c0_43 = arith.constant 0 : index
    %77 = vector.load %arg18[%c0_42, %c0_43] : memref<1x128xf32, #tpu.memory_space<vmem>>, vector<1x128xf32>
    %78 = vector.broadcast %77 : vector<1x128xf32> to vector<64x128xf32>
    %79 = arith.addf %76, %78 : vector<64x128xf32>
    %c0_44 = arith.constant 0 : index
    %c0_45 = arith.constant 0 : index
    %80 = vector.load %arg19[%c0_44, %c0_45] : memref<64x128xf32, #tpu.memory_space<vmem>>, vector<64x128xf32>
    tpu.vector_store %arg19[%c0_44, %c0_45], %79 {strides = array<i32>} : memref<64x128xf32, #tpu.memory_space<vmem>>, vector<64x128xf32>,
    return
  }
  func.func @transform_0(%arg0: i32) -> (i32, i32) {
    %c0_i32 = arith.constant 0 : i32
    %c0_i32_0 = arith.constant 0 : i32
    return %arg0, %c0_i32 : i32, i32
  }
  func.func @transform_1(%arg0: i32) -> (i32, i32) {
    %c0_i32 = arith.constant 0 : i32
    %c0_i32_0 = arith.constant 0 : i32
    %c0_i32_1 = arith.constant 0 : i32
    return %c0_i32, %c0_i32_0 : i32, i32
  }
  func.func @transform_2(%arg0: i32) -> (i32, i32) {
    %c0_i32 = arith.constant 0 : i32
    %c0_i32_0 = arith.constant 0 : i32
    %c0_i32_1 = arith.constant 0 : i32
    return %c0_i32, %c0_i32_0 : i32, i32
  }
  func.func @transform_3(%arg0: i32) -> (i32, i32) {
    %c0_i32 = arith.constant 0 : i32
    %c0_i32_0 = arith.constant 0 : i32
    return %arg0, %c0_i32 : i32, i32
  }
  func.func @transform_4(%arg0: i32) -> (i32, i32) {
    %c0_i32 = arith.constant 0 : i32
    %c0_i32_0 = arith.constant 0 : i32
    %c0_i32_1 = arith.constant 0 : i32
    return %c0_i32, %c0_i32_0 : i32, i32
  }
  func.func @transform_5(%arg0: i32) -> (i32, i32) {
    %c0_i32 = arith.constant 0 : i32
    %c0_i32_0 = arith.constant 0 : i32
    %c0_i32_1 = arith.constant 0 : i32
    return %c0_i32, %c0_i32_0 : i32, i32
  }
  func.func @transform_6(%arg0: i32) -> (i32, i32) {
    %c0_i32 = arith.constant 0 : i32
    %c0_i32_0 = arith.constant 0 : i32
    %c0_i32_1 = arith.constant 0 : i32
    return %c0_i32, %c0_i32_0 : i32, i32
  }
  func.func @transform_7(%arg0: i32) -> (i32, i32) {
    %c0_i32 = arith.constant 0 : i32
    %c0_i32_0 = arith.constant 0 : i32
    %c0_i32_1 = arith.constant 0 : i32
    return %c0_i32, %c0_i32_0 : i32, i32
  }
  func.func @transform_8(%arg0: i32) -> (i32, i32) {
    %c0_i32 = arith.constant 0 : i32
    %c0_i32_0 = arith.constant 0 : i32
    %c0_i32_1 = arith.constant 0 : i32
    return %c0_i32, %c0_i32_0 : i32, i32
  }
  func.func @transform_9(%arg0: i32) -> (i32, i32) {
    %c0_i32 = arith.constant 0 : i32
    %c0_i32_0 = arith.constant 0 : i32
    %c0_i32_1 = arith.constant 0 : i32
    return %c0_i32, %c0_i32_0 : i32, i32
  }
  func.func @transform_10(%arg0: i32) -> (i32, i32) {
    %c0_i32 = arith.constant 0 : i32
    %c0_i32_0 = arith.constant 0 : i32
    %c0_i32_1 = arith.constant 0 : i32
    return %c0_i32, %c0_i32_0 : i32, i32
  }
  func.func @transform_11(%arg0: i32) -> (i32, i32) {
    %c0_i32 = arith.constant 0 : i32
    %c0_i32_0 = arith.constant 0 : i32
    %c0_i32_1 = arith.constant 0 : i32
    return %c0_i32, %c0_i32_0 : i32, i32
  }
  func.func @transform_12(%arg0: i32) -> (i32, i32) {
    %c0_i32 = arith.constant 0 : i32
    %c0_i32_0 = arith.constant 0 : i32
    %c0_i32_1 = arith.constant 0 : i32
    return %c0_i32, %c0_i32_0 : i32, i32
  }
  func.func @transform_13(%arg0: i32) -> (i32, i32) {
    %c0_i32 = arith.constant 0 : i32
    %c0_i32_0 = arith.constant 0 : i32
    %c0_i32_1 = arith.constant 0 : i32
    return %c0_i32, %c0_i32_0 : i32, i32
  }
  func.func @transform_14(%arg0: i32) -> (i32, i32) {
    %c0_i32 = arith.constant 0 : i32
    %c0_i32_0 = arith.constant 0 : i32
    %c0_i32_1 = arith.constant 0 : i32
    return %c0_i32, %c0_i32_0 : i32, i32
  }
  func.func @transform_15(%arg0: i32) -> (i32, i32) {
    %c0_i32 = arith.constant 0 : i32
    %c0_i32_0 = arith.constant 0 : i32
    %c0_i32_1 = arith.constant 0 : i32
    return %c0_i32, %c0_i32_0 : i32, i32
  }
  func.func @transform_16(%arg0: i32) -> (i32, i32) {
    %c0_i32 = arith.constant 0 : i32
    %c0_i32_0 = arith.constant 0 : i32
    %c0_i32_1 = arith.constant 0 : i32
    return %c0_i32, %c0_i32_0 : i32, i32
  }
  func.func @transform_17(%arg0: i32) -> (i32, i32) {
    %c0_i32 = arith.constant 0 : i32
    %c0_i32_0 = arith.constant 0 : i32
    %c0_i32_1 = arith.constant 0 : i32
    return %c0_i32, %c0_i32_0 : i32, i32
  }
  func.func @transform_18(%arg0: i32) -> (i32, i32) {
    %c0_i32 = arith.constant 0 : i32
    %c0_i32_0 = arith.constant 0 : i32
    return %arg0, %c0_i32 : i32, i32
  }
}

</mosaic_0001>

<llo_original>
// kernel: tpu_custom_call.1
$region0: #{tpu_custom_call.1}
  #allocation0 [shape = 'u32[]', space=smem, size = 0x4, offset = 0x4, fixed_abs, tag = 'smem constant byte address 0x4 - core index']
  #allocation1 [shape = 'u32[144,128]{1,0:T(1,128)}', space=vmem, size = 0x12000, scoped, tag = 'internal scratch']
  %s0 = inlined_call_operand.vmem [shape: f32[256,1], index: 0, kind: input, shape index: {}]
  %s1 = inlined_call_operand.vmem [shape: f32[1,128], index: 1, kind: input, shape index: {}]
  %s2 = inlined_call_operand.vmem [shape: f32[1,128], index: 2, kind: input, shape index: {}]
  %s3 = inlined_call_operand.vmem [shape: f32[256,2], index: 3, kind: input, shape index: {}]
  %s4 = inlined_call_operand.vmem [shape: f32[128,128], index: 4, kind: input, shape index: {}]
  %s5 = inlined_call_operand.vmem [shape: f32[1,128], index: 5, kind: input, shape index: {}]
  %s6 = inlined_call_operand.vmem [shape: f32[128,128], index: 6, kind: input, shape index: {}]
  %s7 = inlined_call_operand.vmem [shape: f32[1,128], index: 7, kind: input, shape index: {}]
  %s8 = inlined_call_operand.vmem [shape: f32[2,128], index: 8, kind: input, shape index: {}]
  %s9 = inlined_call_operand.vmem [shape: f32[1,128], index: 9, kind: input, shape index: {}]
  %s10 = inlined_call_operand.vmem [shape: f32[128,128], index: 10, kind: input, shape index: {}]
  %s11 = inlined_call_operand.vmem [shape: f32[1,128], index: 11, kind: input, shape index: {}]
  %s12 = inlined_call_operand.vmem [shape: f32[128,128], index: 12, kind: input, shape index: {}]
  %s13 = inlined_call_operand.vmem [shape: f32[1,128], index: 13, kind: input, shape index: {}]
  %s14 = inlined_call_operand.hbm [shape: f32[128,128], index: 14, kind: input, shape index: {}]
  %s15 = inlined_call_operand.vmem [shape: f32[1,128], index: 15, kind: input, shape index: {}]
  %s16 = inlined_call_operand.hbm [shape: f32[128,128], index: 16, kind: input, shape index: {}]
  %s17 = inlined_call_operand.vmem [shape: f32[1,128], index: 17, kind: input, shape index: {}]
  %s18 = inlined_call_operand.hbm [shape: f32[256,128], index: 18, kind: output, shape index: {}]
  %s19 = sld [smem:[#allocation0]]
  $region113: #{tpu_custom_call.1} parent=0
    _
  %s21 = ssub.s32 1, %s19
  %s22 = scalar_select 0, %s21, %s19
  $region1: #{tpu_custom_call.1} parent=0
    #allocation2 [shape = 'u8[65536]{0}', space=vmem, size = 0x10000, scoped, tag = 'input window, operand 14, single buffered']
    #allocation3 [shape = 's32[2]{0}', space=sflag, size = 0x8, scoped, tag = 'scoped memory for tpu_custom_call.1']
    #allocation4 [shape = 's32[2]{0}', space=sflag, size = 0x8, scoped, tag = 'scoped memory for tpu_custom_call.1']
    #allocation5 [shape = 'u8[65536]{0}', space=vmem, size = 0x10000, scoped, tag = 'input window, operand 16, single buffered']
    #allocation6 [shape = 's32[1]{0}', space=sflag, size = 0x4, scoped, tag = 'scoped memory for tpu_custom_call.1']
    #allocation7 [shape = 'u8[65536]{0}', space=vmem, size = 0x10000, scoped, tag = 'output window, operand 0']
    %23 = vsyncpa [#allocation3], 0
    %24 = vsyncpa [#allocation6], 0
    %25 = vsyncpa [#allocation4], 0
    %s26 = scalar_lea.sflag [#allocation4], 1
    %27 = vsyncpa %s26, 0
    loop: start=0, step=1, limit=6
    $region2: #{tpu_custom_call.1} parent=1 // loop_pre_header
      _
    $region3: #{tpu_custom_call.1} parent=1 // loop_header
      %s29 = sphi 0, %s33
      %p30 = scmp.ge.s32.totalorder %s29, 6
      %s39 = sphi 0, %s41
      %s42 = sphi 0, %s39
      %s43 = sphi 0, %s42
      %s59 = sphi 0, %s43
      %s63 = sphi 0, %s63
      %s65 = sphi 0, %s63
      %s66 = sphi 0, %s65
      %s80 = sphi 0, %s66
      %s84 = sphi 0, %s84
      %s86 = sphi 0, %s84
      %s87 = sphi 0, %s86
      %s101 = sphi 0, %s87
      %s107 = sphi 0, %s109
      %s110 = sphi 0, %s107
      %s111 = sphi 0, %s110
      %s127 = sphi 0, %s111
      %s131 = sphi 0, %s131
      %s133 = sphi 0, %s131
      %s134 = sphi 0, %s133
      %s148 = sphi 0, %s134
      %s152 = sphi 0, %s152
      %s154 = sphi 0, %s152
      %s155 = sphi 0, %s154
      %s169 = sphi 0, %s155
      %s173 = sphi 0, %s173
      %s175 = sphi 0, %s173
      %s176 = sphi 0, %s175
      %s190 = sphi 0, %s176
      %s194 = sphi 0, %s194
      %s196 = sphi 0, %s194
      %s197 = sphi 0, %s196
      %s211 = sphi 0, %s197
      %s215 = sphi 0, %s215
      %s217 = sphi 0, %s215
      %s218 = sphi 0, %s217
      %s232 = sphi 0, %s218
      %s236 = sphi 0, %s236
      %s238 = sphi 0, %s236
      %s239 = sphi 0, %s238
      %s253 = sphi 0, %s239
      %s257 = sphi 0, %s257
      %s259 = sphi 0, %s257
      %s260 = sphi 0, %s259
      %s274 = sphi 0, %s260
      %s278 = sphi 0, %s278
      %s280 = sphi 0, %s278
      %s281 = sphi 0, %s280
      %s295 = sphi 0, %s281
      %s299 = sphi 0, %s299
      %s301 = sphi 0, %s299
      %s302 = sphi 0, %s301
      %s316 = sphi 0, %s302
      %s320 = sphi 0, %s320
      %s322 = sphi 0, %s320
      %s323 = sphi 0, %s322
      %s337 = sphi 0, %s323
      %s341 = sphi 0, %s341
      %s343 = sphi 0, %s341
      %s344 = sphi 0, %s343
      %s358 = sphi 0, %s344
      %s362 = sphi 0, %s362
      %s364 = sphi 0, %s362
      %s365 = sphi 0, %s364
      %s379 = sphi 0, %s365
      %s383 = sphi 0, %s383
      %s385 = sphi 0, %s383
      %s386 = sphi 0, %s385
      %s400 = sphi 0, %s386
      %s404 = sphi 0, %s404
      %s406 = sphi 0, %s404
      %s407 = sphi 0, %s406
      %s421 = sphi 0, %s407
      %s427 = sphi 0, %s429
      %s430 = sphi 0, %s427
      %s431 = sphi 0, %s430
      %s447 = sphi 0, %s431
    $region4: #{tpu_custom_call.1} parent=1 // loop_header_branch
      %32 = sbr.rel (%p30) target = $region8
    $region5: #{tpu_custom_call.1} parent=1 // loop_body
      %s34 = ssub.s32 %s29, 1
      %s35 = ssub.s32 %s29, 2
      %s36 = sadd.s32 %s29, 1
      %s37 = ssub.s32 %s29, %s36
      %p38 = scmp.eq.s32.totalorder %s37, 0
      %s40 = sadd.s32 %s39, 1
      %s41 = scalar_select %p38, %s39, %s40
      %p44 = pneg %p38
      %p45 = scmp.eq.s32.totalorder %s29, 3
      %p46 = por %p44, %p45
      %p47 = scmp.ne.s32.totalorder %s39, %s42
      %p48 = scmp.eq.s32.totalorder %s29, 0
      %p49 = por %p47, %p48
      %p50 = scmp.ne.s32.totalorder %s39, %s42
      %p51 = scmp.eq.s32.totalorder %s34, 3
      %p52 = por %p50, %p51
      %p53 = scmp.ne.s32.totalorder %s42, %s43
      %p54 = scmp.eq.s32.totalorder %s34, 0
      %p55 = por %p53, %p54
      %p56 = scmp.ne.s32.totalorder %s42, %s43
      %p57 = scmp.eq.s32.totalorder %s35, 3
      %p58 = por %p56, %p57
      %p60 = scmp.ne.s32.totalorder %s43, %s59
      %p61 = scmp.eq.s32.totalorder %s35, 0
      %p62 = por %p60, %p61
      %s64 = sadd.s32 %s63, 1
      %p67 = scmp.eq.s32.totalorder %s29, 3
      %p68 = scmp.ne.s32.totalorder %s63, %s65
      %p69 = scmp.eq.s32.totalorder %s29, 0
      %p70 = por %p68, %p69
      %p71 = scmp.ne.s32.totalorder %s63, %s65
      %p72 = scmp.eq.s32.totalorder %s34, 3
      %p73 = por %p71, %p72
      %p74 = scmp.ne.s32.totalorder %s65, %s66
      %p75 = scmp.eq.s32.totalorder %s34, 0
      %p76 = por %p74, %p75
      %p77 = scmp.ne.s32.totalorder %s65, %s66
      %p78 = scmp.eq.s32.totalorder %s35, 3
      %p79 = por %p77, %p78
      %p81 = scmp.ne.s32.totalorder %s66, %s80
      %p82 = scmp.eq.s32.totalorder %s35, 0
      %p83 = por %p81, %p82
      %s85 = sadd.s32 %s84, 1
      %p88 = scmp.eq.s32.totalorder %s29, 3
      %p89 = scmp.ne.s32.totalorder %s84, %s86
      %p90 = scmp.eq.s32.totalorder %s29, 0
      %p91 = por %p89, %p90
      %p92 = scmp.ne.s32.totalorder %s84, %s86
      %p93 = scmp.eq.s32.totalorder %s34, 3
      %p94 = por %p92, %p93
      %p95 = scmp.ne.s32.totalorder %s86, %s87
      %p96 = scmp.eq.s32.totalorder %s34, 0
      %p97 = por %p95, %p96
      %p98 = scmp.ne.s32.totalorder %s86, %s87
      %p99 = scmp.eq.s32.totalorder %s35, 3
      %p100 = por %p98, %p99
      %p102 = scmp.ne.s32.totalorder %s87, %s101
      %p103 = scmp.eq.s32.totalorder %s35, 0
      %p104 = por %p102, %p103
      %s105 = ssub.s32 %s29, %s36
      %p106 = scmp.eq.s32.totalorder %s105, 0
      %s108 = sadd.s32 %s107, 1
      %s109 = scalar_select %p106, %s107, %s108
      %p112 = pneg %p106
      %p113 = scmp.eq.s32.totalorder %s29, 3
      %p114 = por %p112, %p113
      %p115 = scmp.ne.s32.totalorder %s107, %s110
      %p116 = scmp.eq.s32.totalorder %s29, 0
      %p117 = por %p115, %p116
      %p118 = scmp.ne.s32.totalorder %s107, %s110
      %p119 = scmp.eq.s32.totalorder %s34, 3
      %p120 = por %p118, %p119
      %p121 = scmp.ne.s32.totalorder %s110, %s111
      %p122 = scmp.eq.s32.totalorder %s34, 0
      %p123 = por %p121, %p122
      %p124 = scmp.ne.s32.totalorder %s110, %s111
      %p125 = scmp.eq.s32.totalorder %s35, 3
      %p126 = por %p124, %p125
      %p128 = scmp.ne.s32.totalorder %s111, %s127
      %p129 = scmp.eq.s32.totalorder %s35, 0
      %p130 = por %p128, %p129
      %s132 = sadd.s32 %s131, 1
      %p135 = scmp.eq.s32.totalorder %s29, 3
      %p136 = scmp.ne.s32.totalorder %s131, %s133
      %p137 = scmp.eq.s32.totalorder %s29, 0
      %p138 = por %p136, %p137
      %p139 = scmp.ne.s32.totalorder %s131, %s133
      %p140 = scmp.eq.s32.totalorder %s34, 3
      %p141 = por %p139, %p140
      %p142 = scmp.ne.s32.totalorder %s133, %s134
      %p143 = scmp.eq.s32.totalorder %s34, 0
      %p144 = por %p142, %p143
      %p145 = scmp.ne.s32.totalorder %s133, %s134
      %p146 = scmp.eq.s32.totalorder %s35, 3
      %p147 = por %p145, %p146
      %p149 = scmp.ne.s32.totalorder %s134, %s148
      %p150 = scmp.eq.s32.totalorder %s35, 0
      %p151 = por %p149, %p150
      %s153 = sadd.s32 %s152, 1
      %p156 = scmp.eq.s32.totalorder %s29, 3
      %p157 = scmp.ne.s32.totalorder %s152, %s154
      %p158 = scmp.eq.s32.totalorder %s29, 0
      %p159 = por %p157, %p158
      %p160 = scmp.ne.s32.totalorder %s152, %s154
      %p161 = scmp.eq.s32.totalorder %s34, 3
      %p162 = por %p160, %p161
      %p163 = scmp.ne.s32.totalorder %s154, %s155
      %p164 = scmp.eq.s32.totalorder %s34, 0
      %p165 = por %p163, %p164
      %p166 = scmp.ne.s32.totalorder %s154, %s155
      %p167 = scmp.eq.s32.totalorder %s35, 3
      %p168 = por %p166, %p167
      %p170 = scmp.ne.s32.totalorder %s155, %s169
      %p171 = scmp.eq.s32.totalorder %s35, 0
      %p172 = por %p170, %p171
      %s174 = sadd.s32 %s173, 1
      %p177 = scmp.eq.s32.totalorder %s29, 3
      %p178 = scmp.ne.s32.totalorder %s173, %s175
      %p179 = scmp.eq.s32.totalorder %s29, 0
      %p180 = por %p178, %p179
      %p181 = scmp.ne.s32.totalorder %s173, %s175
      %p182 = scmp.eq.s32.totalorder %s34, 3
      %p183 = por %p181, %p182
      %p184 = scmp.ne.s32.totalorder %s175, %s176
      %p185 = scmp.eq.s32.totalorder %s34, 0
      %p186 = por %p184, %p185
      %p187 = scmp.ne.s32.totalorder %s175, %s176
      %p188 = scmp.eq.s32.totalorder %s35, 3
      %p189 = por %p187, %p188
      %p191 = scmp.ne.s32.totalorder %s176, %s190
      %p192 = scmp.eq.s32.totalorder %s35, 0
      %p193 = por %p191, %p192
      %s195 = sadd.s32 %s194, 1
      %p198 = scmp.eq.s32.totalorder %s29, 3
      %p199 = scmp.ne.s32.totalorder %s194, %s196
      %p200 = scmp.eq.s32.totalorder %s29, 0
      %p201 = por %p199, %p200
      %p202 = scmp.ne.s32.totalorder %s194, %s196
      %p203 = scmp.eq.s32.totalorder %s34, 3
      %p204 = por %p202, %p203
      %p205 = scmp.ne.s32.totalorder %s196, %s197
      %p206 = scmp.eq.s32.totalorder %s34, 0
      %p207 = por %p205, %p206
      %p208 = scmp.ne.s32.totalorder %s196, %s197
      %p209 = scmp.eq.s32.totalorder %s35, 3
      %p210 = por %p208, %p209
      %p212 = scmp.ne.s32.totalorder %s197, %s211
      %p213 = scmp.eq.s32.totalorder %s35, 0
      %p214 = por %p212, %p213
      %s216 = sadd.s32 %s215, 1
      %p219 = scmp.eq.s32.totalorder %s29, 3
      %p220 = scmp.ne.s32.totalorder %s215, %s217
      %p221 = scmp.eq.s32.totalorder %s29, 0
      %p222 = por %p220, %p221
      %p223 = scmp.ne.s32.totalorder %s215, %s217
      %p224 = scmp.eq.s32.totalorder %s34, 3
      %p225 = por %p223, %p224
      %p226 = scmp.ne.s32.totalorder %s217, %s218
      %p227 = scmp.eq.s32.totalorder %s34, 0
      %p228 = por %p226, %p227
      %p229 = scmp.ne.s32.totalorder %s217, %s218
      %p230 = scmp.eq.s32.totalorder %s35, 3
      %p231 = por %p229, %p230
      %p233 = scmp.ne.s32.totalorder %s218, %s232
      %p234 = scmp.eq.s32.totalorder %s35, 0
      %p235 = por %p233, %p234
      %s237 = sadd.s32 %s236, 1
      %p240 = scmp.eq.s32.totalorder %s29, 3
      %p241 = scmp.ne.s32.totalorder %s236, %s238
      %p242 = scmp.eq.s32.totalorder %s29, 0
      %p243 = por %p241, %p242
      %p244 = scmp.ne.s32.totalorder %s236, %s238
      %p245 = scmp.eq.s32.totalorder %s34, 3
      %p246 = por %p244, %p245
      %p247 = scmp.ne.s32.totalorder %s238, %s239
      %p248 = scmp.eq.s32.totalorder %s34, 0
      %p249 = por %p247, %p248
      %p250 = scmp.ne.s32.totalorder %s238, %s239
      %p251 = scmp.eq.s32.totalorder %s35, 3
      %p252 = por %p250, %p251
      %p254 = scmp.ne.s32.totalorder %s239, %s253
      %p255 = scmp.eq.s32.totalorder %s35, 0
      %p256 = por %p254, %p255
      %s258 = sadd.s32 %s257, 1
      %p261 = scmp.eq.s32.totalorder %s29, 3
      %p262 = scmp.ne.s32.totalorder %s257, %s259
      %p263 = scmp.eq.s32.totalorder %s29, 0
      %p264 = por %p262, %p263
      %p265 = scmp.ne.s32.totalorder %s257, %s259
      %p266 = scmp.eq.s32.totalorder %s34, 3
      %p267 = por %p265, %p266
      %p268 = scmp.ne.s32.totalorder %s259, %s260
      %p269 = scmp.eq.s32.totalorder %s34, 0
      %p270 = por %p268, %p269
      %p271 = scmp.ne.s32.totalorder %s259, %s260
      %p272 = scmp.eq.s32.totalorder %s35, 3
      %p273 = por %p271, %p272
      %p275 = scmp.ne.s32.totalorder %s260, %s274
      %p276 = scmp.eq.s32.totalorder %s35, 0
      %p277 = por %p275, %p276
      %s279 = sadd.s32 %s278, 1
      %p282 = scmp.eq.s32.totalorder %s29, 3
      %p283 = scmp.ne.s32.totalorder %s278, %s280
      %p284 = scmp.eq.s32.totalorder %s29, 0
      %p285 = por %p283, %p284
      %p286 = scmp.ne.s32.totalorder %s278, %s280
      %p287 = scmp.eq.s32.totalorder %s34, 3
      %p288 = por %p286, %p287
      %p289 = scmp.ne.s32.totalorder %s280, %s281
      %p290 = scmp.eq.s32.totalorder %s34, 0
      %p291 = por %p289, %p290
      %p292 = scmp.ne.s32.totalorder %s280, %s281
      %p293 = scmp.eq.s32.totalorder %s35, 3
      %p294 = por %p292, %p293
      %p296 = scmp.ne.s32.totalorder %s281, %s295
      %p297 = scmp.eq.s32.totalorder %s35, 0
      %p298 = por %p296, %p297
      %s300 = sadd.s32 %s299, 1
      %p303 = scmp.eq.s32.totalorder %s29, 3
      %p304 = scmp.ne.s32.totalorder %s299, %s301
      %p305 = scmp.eq.s32.totalorder %s29, 0
      %p306 = por %p304, %p305
      %p307 = scmp.ne.s32.totalorder %s299, %s301
      %p308 = scmp.eq.s32.totalorder %s34, 3
      %p309 = por %p307, %p308
      %p310 = scmp.ne.s32.totalorder %s301, %s302
      %p311 = scmp.eq.s32.totalorder %s34, 0
      %p312 = por %p310, %p311
      %p313 = scmp.ne.s32.totalorder %s301, %s302
      %p314 = scmp.eq.s32.totalorder %s35, 3
      %p315 = por %p313, %p314
      %p317 = scmp.ne.s32.totalorder %s302, %s316
      %p318 = scmp.eq.s32.totalorder %s35, 0
      %p319 = por %p317, %p318
      %s321 = sadd.s32 %s320, 1
      %p324 = scmp.eq.s32.totalorder %s29, 3
      %p325 = scmp.ne.s32.totalorder %s320, %s322
      %p326 = scmp.eq.s32.totalorder %s29, 0
      %p327 = por %p325, %p326
      %p328 = scmp.ne.s32.totalorder %s320, %s322
      %p329 = scmp.eq.s32.totalorder %s34, 3
      %p330 = por %p328, %p329
      %p331 = scmp.ne.s32.totalorder %s322, %s323
      %p332 = scmp.eq.s32.totalorder %s34, 0
      %p333 = por %p331, %p332
      %p334 = scmp.ne.s32.totalorder %s322, %s323
      %p335 = scmp.eq.s32.totalorder %s35, 3
      %p336 = por %p334, %p335
      %p338 = scmp.ne.s32.totalorder %s323, %s337
      %p339 = scmp.eq.s32.totalorder %s35, 0
      %p340 = por %p338, %p339
      %s342 = sadd.s32 %s341, 1
      %p345 = scmp.eq.s32.totalorder %s29, 3
      %p346 = scmp.ne.s32.totalorder %s341, %s343
      %p347 = scmp.eq.s32.totalorder %s29, 0
      %p348 = por %p346, %p347
      %p349 = scmp.ne.s32.totalorder %s341, %s343
      %p350 = scmp.eq.s32.totalorder %s34, 3
      %p351 = por %p349, %p350
      %p352 = scmp.ne.s32.totalorder %s343, %s344
      %p353 = scmp.eq.s32.totalorder %s34, 0
      %p354 = por %p352, %p353
      %p355 = scmp.ne.s32.totalorder %s343, %s344
      %p356 = scmp.eq.s32.totalorder %s35, 3
      %p357 = por %p355, %p356
      %p359 = scmp.ne.s32.totalorder %s344, %s358
      %p360 = scmp.eq.s32.totalorder %s35, 0
      %p361 = por %p359, %p360
      %s363 = sadd.s32 %s362, 1
      %p366 = scmp.eq.s32.totalorder %s29, 3
      %p367 = scmp.ne.s32.totalorder %s362, %s364
      %p368 = scmp.eq.s32.totalorder %s29, 0
      %p369 = por %p367, %p368
      %p370 = scmp.ne.s32.totalorder %s362, %s364
      %p371 = scmp.eq.s32.totalorder %s34, 3
      %p372 = por %p370, %p371
      %p373 = scmp.ne.s32.totalorder %s364, %s365
      %p374 = scmp.eq.s32.totalorder %s34, 0
      %p375 = por %p373, %p374
      %p376 = scmp.ne.s32.totalorder %s364, %s365
      %p377 = scmp.eq.s32.totalorder %s35, 3
      %p378 = por %p376, %p377
      %p380 = scmp.ne.s32.totalorder %s365, %s379
      %p381 = scmp.eq.s32.totalorder %s35, 0
      %p382 = por %p380, %p381
      %s384 = sadd.s32 %s383, 1
      %p387 = scmp.eq.s32.totalorder %s29, 3
      %p388 = scmp.ne.s32.totalorder %s383, %s385
      %p389 = scmp.eq.s32.totalorder %s29, 0
      %p390 = por %p388, %p389
      %p391 = scmp.ne.s32.totalorder %s383, %s385
      %p392 = scmp.eq.s32.totalorder %s34, 3
      %p393 = por %p391, %p392
      %p394 = scmp.ne.s32.totalorder %s385, %s386
      %p395 = scmp.eq.s32.totalorder %s34, 0
      %p396 = por %p394, %p395
      %p397 = scmp.ne.s32.totalorder %s385, %s386
      %p398 = scmp.eq.s32.totalorder %s35, 3
      %p399 = por %p397, %p398
      %p401 = scmp.ne.s32.totalorder %s386, %s400
      %p402 = scmp.eq.s32.totalorder %s35, 0
      %p403 = por %p401, %p402
      %s405 = sadd.s32 %s404, 1
      %p408 = scmp.eq.s32.totalorder %s29, 3
      %p409 = scmp.ne.s32.totalorder %s404, %s406
      %p410 = scmp.eq.s32.totalorder %s29, 0
      %p411 = por %p409, %p410
      %p412 = scmp.ne.s32.totalorder %s404, %s406
      %p413 = scmp.eq.s32.totalorder %s34, 3
      %p414 = por %p412, %p413
      %p415 = scmp.ne.s32.totalorder %s406, %s407
      %p416 = scmp.eq.s32.totalorder %s34, 0
      %p417 = por %p415, %p416
      %p418 = scmp.ne.s32.totalorder %s406, %s407
      %p419 = scmp.eq.s32.totalorder %s35, 3
      %p420 = por %p418, %p419
      %p422 = scmp.ne.s32.totalorder %s407, %s421
      %p423 = scmp.eq.s32.totalorder %s35, 0
      %p424 = por %p422, %p423
      %s425 = ssub.s32 %s29, %s36
      %p426 = scmp.eq.s32.totalorder %s425, 0
      %s428 = sadd.s32 %s427, 1
      %s429 = scalar_select %p426, %s427, %s428
      %p432 = pneg %p426
      %p433 = scmp.eq.s32.totalorder %s29, 3
      %p434 = por %p432, %p433
      %p435 = scmp.ne.s32.totalorder %s427, %s430
      %p436 = scmp.eq.s32.totalorder %s29, 0
      %p437 = por %p435, %p436
      %p438 = scmp.ne.s32.totalorder %s427, %s430
      %p439 = scmp.eq.s32.totalorder %s34, 3
      %p440 = por %p438, %p439
      %p441 = scmp.ne.s32.totalorder %s430, %s431
      %p442 = scmp.eq.s32.totalorder %s34, 0
      %p443 = por %p441, %p442
      %p444 = scmp.ne.s32.totalorder %s430, %s431
      %p445 = scmp.eq.s32.totalorder %s35, 3
      %p446 = por %p444, %p445
      %p448 = scmp.ne.s32.totalorder %s431, %s447
      %p449 = scmp.eq.s32.totalorder %s35, 0
      %p450 = por %p448, %p449
      %p451 = scmp.le.s32.totalorder 1, %s29
      %p452 = scmp.lt.s32.totalorder %s29, 5
      %p453 = pnand %p451, %p452
      %p454 = pneg %p453
      // Predicated region
      $region9: #{tpu_custom_call.1} parent=5 // pred_check
        _
      $region10: #{tpu_custom_call.1} parent=5 // pred_check_branch
        %456 = sbr.rel (%p453) target = $region12
      $region11: #{tpu_custom_call.1} parent=5 // pred_region
        %s457 = ssub.s32 %s29, 1
        // Predicated region
        $region13: #{tpu_custom_call.1} parent=11 // pred_check
          %p458 = pneg %p76
        $region14: #{tpu_custom_call.1} parent=11 // pred_check_branch
          %460 = sbr.rel (%p458) target = $region16
        $region15: #{tpu_custom_call.1} parent=11 // pred_region
          _
        $region16: #{tpu_custom_call.1} parent=11 // pred_fallthru
          _
        // Predicated region
        $region17: #{tpu_custom_call.1} parent=11 // pred_check
          %p461 = pneg %p97
        $region18: #{tpu_custom_call.1} parent=11 // pred_check_branch
          %463 = sbr.rel (%p461) target = $region20
        $region19: #{tpu_custom_call.1} parent=11 // pred_region
          _
        $region20: #{tpu_custom_call.1} parent=11 // pred_fallthru
          _
        // Predicated region
        $region21: #{tpu_custom_call.1} parent=11 // pred_check
          %p464 = pneg %p144
        $region22: #{tpu_custom_call.1} parent=11 // pred_check_branch
          %466 = sbr.rel (%p464) target = $region24
        $region23: #{tpu_custom_call.1} parent=11 // pred_region
          _
        $region24: #{tpu_custom_call.1} parent=11 // pred_fallthru
          _
        // Predicated region
        $region25: #{tpu_custom_call.1} parent=11 // pred_check
          %p467 = pneg %p165
        $region26: #{tpu_custom_call.1} parent=11 // pred_check_branch
          %469 = sbr.rel (%p467) target = $region28
        $region27: #{tpu_custom_call.1} parent=11 // pred_region
          _
        $region28: #{tpu_custom_call.1} parent=11 // pred_fallthru
          _
        // Predicated region
        $region29: #{tpu_custom_call.1} parent=11 // pred_check
          %p470 = pneg %p186
        $region30: #{tpu_custom_call.1} parent=11 // pred_check_branch
          %472 = sbr.rel (%p470) target = $region32
        $region31: #{tpu_custom_call.1} parent=11 // pred_region
          _
        $region32: #{tpu_custom_call.1} parent=11 // pred_fallthru
          _
        // Predicated region
        $region33: #{tpu_custom_call.1} parent=11 // pred_check
          %p473 = pneg %p207
        $region34: #{tpu_custom_call.1} parent=11 // pred_check_branch
          %475 = sbr.rel (%p473) target = $region36
        $region35: #{tpu_custom_call.1} parent=11 // pred_region
          _
        $region36: #{tpu_custom_call.1} parent=11 // pred_fallthru
          _
        // Predicated region
        $region37: #{tpu_custom_call.1} parent=11 // pred_check
          %p476 = pneg %p228
        $region38: #{tpu_custom_call.1} parent=11 // pred_check_branch
          %478 = sbr.rel (%p476) target = $region40
        $region39: #{tpu_custom_call.1} parent=11 // pred_region
          _
        $region40: #{tpu_custom_call.1} parent=11 // pred_fallthru
          _
        // Predicated region
        $region41: #{tpu_custom_call.1} parent=11 // pred_check
          %p479 = pneg %p249
        $region42: #{tpu_custom_call.1} parent=11 // pred_check_branch
          %481 = sbr.rel (%p479) target = $region44
        $region43: #{tpu_custom_call.1} parent=11 // pred_region
          _
        $region44: #{tpu_custom_call.1} parent=11 // pred_fallthru
          _
        // Predicated region
        $region45: #{tpu_custom_call.1} parent=11 // pred_check
          %p482 = pneg %p270
        $region46: #{tpu_custom_call.1} parent=11 // pred_check_branch
          %484 = sbr.rel (%p482) target = $region48
        $region47: #{tpu_custom_call.1} parent=11 // pred_region
          _
        $region48: #{tpu_custom_call.1} parent=11 // pred_fallthru
          _
        // Predicated region
        $region49: #{tpu_custom_call.1} parent=11 // pred_check
          %p485 = pneg %p291
        $region50: #{tpu_custom_call.1} parent=11 // pred_check_branch
          %487 = sbr.rel (%p485) target = $region52
        $region51: #{tpu_custom_call.1} parent=11 // pred_region
          _
        $region52: #{tpu_custom_call.1} parent=11 // pred_fallthru
          _
        // Predicated region
        $region53: #{tpu_custom_call.1} parent=11 // pred_check
          %p488 = pneg %p312
        $region54: #{tpu_custom_call.1} parent=11 // pred_check_branch
          %490 = sbr.rel (%p488) target = $region56
        $region55: #{tpu_custom_call.1} parent=11 // pred_region
          _
        $region56: #{tpu_custom_call.1} parent=11 // pred_fallthru
          _
        // Predicated region
        $region57: #{tpu_custom_call.1} parent=11 // pred_check
          %p491 = pneg %p333
        $region58: #{tpu_custom_call.1} parent=11 // pred_check_branch
          %493 = sbr.rel (%p491) target = $region60
        $region59: #{tpu_custom_call.1} parent=11 // pred_region
          _
        $region60: #{tpu_custom_call.1} parent=11 // pred_fallthru
          _
        // Predicated region
        $region61: #{tpu_custom_call.1} parent=11 // pred_check
          %p494 = pneg %p354
        $region62: #{tpu_custom_call.1} parent=11 // pred_check_branch
          %496 = sbr.rel (%p494) target = $region64
        $region63: #{tpu_custom_call.1} parent=11 // pred_region
          %s498 = ssub.s32 2048, 2048
          %499 = vsyncadd [#allocation3], %s498
          %s500 = sshll.u32 [#allocation2], 4
          %s501 = int_to_ptr.vmem [resolvable:$true] %s500
          %506 = dma.hbm_to_vmem [thread:$0]  %s14, 2048, %s501, [#allocation3], 128, 128, 8
        $region64: #{tpu_custom_call.1} parent=11 // pred_fallthru
          _
        // Predicated region
        $region65: #{tpu_custom_call.1} parent=11 // pred_check
          %p507 = pneg %p375
        $region66: #{tpu_custom_call.1} parent=11 // pred_check_branch
          %509 = sbr.rel (%p507) target = $region68
        $region67: #{tpu_custom_call.1} parent=11 // pred_region
          _
        $region68: #{tpu_custom_call.1} parent=11 // pred_fallthru
          _
        // Predicated region
        $region69: #{tpu_custom_call.1} parent=11 // pred_check
          %p510 = pneg %p396
        $region70: #{tpu_custom_call.1} parent=11 // pred_check_branch
          %512 = sbr.rel (%p510) target = $region72
        $region71: #{tpu_custom_call.1} parent=11 // pred_region
          %s514 = ssub.s32 2048, 2048
          %515 = vsyncadd [#allocation6], %s514
          %s516 = sshll.u32 [#allocation5], 4
          %s517 = int_to_ptr.vmem [resolvable:$true] %s516
          %522 = dma.hbm_to_vmem [thread:$0]  %s16, 2048, %s517, [#allocation6], 128, 128, 8
        $region72: #{tpu_custom_call.1} parent=11 // pred_fallthru
          _
        // Predicated region
        $region73: #{tpu_custom_call.1} parent=11 // pred_check
          %p523 = pneg %p417
        $region74: #{tpu_custom_call.1} parent=11 // pred_check_branch
          %525 = sbr.rel (%p523) target = $region76
        $region75: #{tpu_custom_call.1} parent=11 // pred_region
          _
        $region76: #{tpu_custom_call.1} parent=11 // pred_fallthru
          _
      $region12: #{tpu_custom_call.1} parent=5 // pred_fallthru
        _
      %p526 = scmp.lt.s32.totalorder %s29, 4
      // Predicated region
      $region77: #{tpu_custom_call.1} parent=5 // pred_check
        %p527 = pneg %p526
      $region78: #{tpu_custom_call.1} parent=5 // pred_check_branch
        %529 = sbr.rel (%p527) target = $region80
      $region79: #{tpu_custom_call.1} parent=5 // pred_region
        // Predicated region
        $region81: #{tpu_custom_call.1} parent=79 // pred_check
          %p530 = pneg %p49
        $region82: #{tpu_custom_call.1} parent=79 // pred_check_branch
          %532 = sbr.rel (%p530) target = $region84
        $region83: #{tpu_custom_call.1} parent=79 // pred_region
          %s533 = smul.u32 8, %s29
          %p534 = scmp.lt.s32.totalorder %s533, 31
          %s535 = scalar_select %p534, %s533, 31
          %s536 = smul.addr %s535, 8
          %s537 = scalar_lea.vmem %s0, %s536
          %s538 = smul.u32 8, %s29
        $region84: #{tpu_custom_call.1} parent=79 // pred_fallthru
          _
        // Predicated region
        $region85: #{tpu_custom_call.1} parent=79 // pred_check
          %p539 = pneg %p117
        $region86: #{tpu_custom_call.1} parent=79 // pred_check_branch
          %541 = sbr.rel (%p539) target = $region88
        $region87: #{tpu_custom_call.1} parent=79 // pred_region
          %s542 = smul.u32 8, %s29
          %p543 = scmp.lt.s32.totalorder %s542, 31
          %s544 = scalar_select %p543, %s542, 31
          %s545 = smul.addr %s544, 8
          %s546 = scalar_lea.vmem %s3, %s545
          %s547 = smul.u32 8, %s29
        $region88: #{tpu_custom_call.1} parent=79 // pred_fallthru
          _
      $region80: #{tpu_custom_call.1} parent=5 // pred_fallthru
        _
      %p548 = scmp.le.s32.totalorder 1, %s29
      %p549 = scmp.lt.s32.totalorder %s29, 5
      %p550 = pnand %p548, %p549
      %p551 = pneg %p550
      // Predicated region
      $region89: #{tpu_custom_call.1} parent=5 // pred_check
        _
      $region90: #{tpu_custom_call.1} parent=5 // pred_check_branch
        %553 = sbr.rel (%p550) target = $region92
      $region91: #{tpu_custom_call.1} parent=5 // pred_region
        %s554 = ssub.s32 %s29, 1
        // Predicated region
        $region93: #{tpu_custom_call.1} parent=91 // pred_check
          %p555 = pneg %p354
        $region94: #{tpu_custom_call.1} parent=91 // pred_check_branch
          %557 = sbr.rel (%p555) target = $region96
        $region95: #{tpu_custom_call.1} parent=91 // pred_region
          %558 = dma.done [#allocation3], 2048
        $region96: #{tpu_custom_call.1} parent=91 // pred_fallthru
          _
        // Predicated region
        $region97: #{tpu_custom_call.1} parent=91 // pred_check
          %p559 = pneg %p396
        $region98: #{tpu_custom_call.1} parent=91 // pred_check_branch
          %561 = sbr.rel (%p559) target = $region100
        $region99: #{tpu_custom_call.1} parent=91 // pred_region
          %562 = dma.done [#allocation6], 2048
        $region100: #{tpu_custom_call.1} parent=91 // pred_fallthru
          _
        %s563 = smul.u32 8, %s34
        %p564 = scmp.lt.s32.totalorder %s563, 31
        %s565 = scalar_select %p564, %s563, 31
        %s566 = smul.addr %s565, 8
        %s567 = scalar_lea.vmem %s0, %s566
        %p568 = pneg %p55
        %p569 = pneg %p52
        %p570 = pneg %p76
        %p571 = pneg %p73
        %p572 = pneg %p97
        %p573 = pneg %p94
        %s574 = smul.u32 8, %s34
        %p575 = scmp.lt.s32.totalorder %s574, 31
        %s576 = scalar_select %p575, %s574, 31
        %s577 = smul.addr %s576, 8
        %s578 = scalar_lea.vmem %s3, %s577
        %p579 = pneg %p123
        %p580 = pneg %p120
        %p581 = pneg %p144
        %p582 = pneg %p141
        %p583 = pneg %p165
        %p584 = pneg %p162
        %p585 = pneg %p186
        %p586 = pneg %p183
        %p587 = pneg %p207
        %p588 = pneg %p204
        %p589 = pneg %p228
        %p590 = pneg %p225
        %p591 = pneg %p249
        %p592 = pneg %p246
        %p593 = pneg %p270
        %p594 = pneg %p267
        %p595 = pneg %p291
        %p596 = pneg %p288
        %p597 = pneg %p312
        %p598 = pneg %p309
        %p599 = pneg %p333
        %p600 = pneg %p330
        %p601 = pneg %p354
        %p602 = pneg %p351
        %p603 = pneg %p375
        %p604 = pneg %p372
        %p605 = pneg %p396
        %p606 = pneg %p393
        %p607 = pneg %p417
        %p608 = pneg %p414
        %p609 = pneg %p443
        %p610 = pneg %p440
        %s611 = sand.u32 %s430, 1
        %s612 = scalar_lea.sflag [#allocation4], %s611
        %s613 = sand.u32 %s430, 1
        %s614 = smul.addr %s613, 64
        %s615 = scalar_lea.vmem [#allocation7], %s614
        %s616 = smul.u32 8, %s34
        %p617 = scmp.lt.s32.totalorder %s616, 31
        %s618 = scalar_select %p617, %s616, 31
        %s619 = smul.addr %s618, 8
        %s620 = scalar_lea.vmem %s0, %s619
        %s621 = smul.u32 8, %s34
        %s622 = smul.u32 8, %s34
        %p623 = scmp.lt.s32.totalorder %s622, 31
        %s624 = scalar_select %p623, %s622, 31
        %s625 = smul.addr %s624, 8
        %s626 = scalar_lea.vmem %s3, %s625
        %s627 = smul.u32 8, %s34
        %s628 = smul.u32 8, %s34
        %v629 = vld [vmem:[%s620] sm:$0xff]
        %v630 = vld [vmem:[%s620 + $0x8] sm:$0xff]
        %v631 = vld [vmem:[%s620 + $0x10] sm:$0xff]
        %v632 = vld [vmem:[%s620 + $0x18] sm:$0xff]
        %v633 = vld [vmem:[%s620 + $0x20] sm:$0xff]
        %v634 = vld [vmem:[%s620 + $0x28] sm:$0xff]
        %v635 = vld [vmem:[%s620 + $0x30] sm:$0xff]
        %v636 = vld [vmem:[%s620 + $0x38] sm:$0xff]
        %v637 = vld [vmem:[%s1] sm:$0x1]
        %639 = vset.pattern.permute.xlu0 0
        %640 = vperm.xlu0 %639, %v629
        %v641 = vpop.permute.xlu0 %640
        %644 = vset.pattern.permute.xlu0 0
        %645 = vperm.xlu0 %644, %v630
        %v646 = vpop.permute.xlu0 %645
        %649 = vset.pattern.permute.xlu0 0
        %650 = vperm.xlu0 %649, %v631
        %v651 = vpop.permute.xlu0 %650
        %654 = vset.pattern.permute.xlu0 0
        %655 = vperm.xlu0 %654, %v632
        %v656 = vpop.permute.xlu0 %655
        %659 = vset.pattern.permute.xlu0 0
        %660 = vperm.xlu0 %659, %v633
        %v661 = vpop.permute.xlu0 %660
        %664 = vset.pattern.permute.xlu0 0
        %665 = vperm.xlu0 %664, %v634
        %v666 = vpop.permute.xlu0 %665
        %669 = vset.pattern.permute.xlu0 0
        %670 = vperm.xlu0 %669, %v635
        %v671 = vpop.permute.xlu0 %670
        %674 = vset.pattern.permute.xlu0 0
        %675 = vperm.xlu0 %674, %v636
        %v676 = vpop.permute.xlu0 %675
        %v679 = vlaneseq
        %v680 = vshrl.u32 %v679, 7
        %v681 = vsub.s32 0, %v680
        %v682 = vrot.slane %v637, %v681
        %v684 = vmul.f32 %v641, %v682
        %v685 = vmul.f32 %v646, %v682
        %v686 = vmul.f32 %v651, %v682
        %v687 = vmul.f32 %v656, %v682
        %v688 = vmul.f32 %v661, %v682
        %v689 = vmul.f32 %v666, %v682
        %v690 = vmul.f32 %v671, %v682
        %v691 = vmul.f32 %v676, %v682
        %v692 = vld [vmem:[%s2] sm:$0x1]
        %v694 = vlaneseq
        %v695 = vshrl.u32 %v694, 7
        %v696 = vsub.s32 0, %v695
        %v697 = vrot.slane %v692, %v696
        %v699 = vsub.f32 %v684, %v697
        %v700 = vsub.f32 %v685, %v697
        %v701 = vsub.f32 %v686, %v697
        %v702 = vsub.f32 %v687, %v697
        %v703 = vsub.f32 %v688, %v697
        %v704 = vsub.f32 %v689, %v697
        %v705 = vsub.f32 %v690, %v697
        %v706 = vsub.f32 %v691, %v697
        %v707 = vand.u32 2147483647, %v699
        %vm708 = vcmp.le.f32.partialorder %v707, 0.7853982
        %vm709 = vcmp.lt.s32.totalorder %v699, 0
        %v710 = vand.u32 %v699, 2139095040
        %v711 = vshrl.u32 %v710, 23
        %v712 = vsub.s32 %v711, 127
        %v713 = vand.u32 2147483647, %v699
        %v714 = vand.u32 %v713, 8388607
        %v715 = vor.u32 %v714, 8388608
        %v716 = vsub.s32 0, %v715
        %v717 = vadd.s32 %v712, 1
        %vm718 = vcmp.gt.s32.totalorder %v717, 0
        %v719 = vsel %vm718, %v717, 0
        %v720 = vshrl.u32 %v719, 5
        %v721 = vand.u32 %v719, 31
        %v722 = vsub.s32 32, %v721
        %v723 = vshrl.u32 683565275, %v722
        %v724 = vshll.u32 683565275, %v721
        %v725 = vshrl.u32 2475754826, %v722
        %v726 = vor.u32 %v724, %v725
        %v727 = vshll.u32 2475754826, %v721
        %v728 = vshrl.u32 2131351028, %v722
        %v729 = vor.u32 %v727, %v728
        %v730 = vshll.u32 2131351028, %v721
        %v731 = vshrl.u32 2102212464, %v722
        %v732 = vor.u32 %v730, %v731
        %v733 = vshll.u32 2102212464, %v721
        %v734 = vshrl.u32 920167782, %v722
        %v735 = vor.u32 %v733, %v734
        %v736 = vshll.u32 920167782, %v721
        %v737 = vshrl.u32 1326507024, %v722
        %v738 = vor.u32 %v736, %v737
        %vm739 = vcmp.lt.s32.totalorder %v720, 1
        %vm740 = vcmp.lt.s32.totalorder %v720, 2
        %vm741 = vcmp.lt.s32.totalorder %v720, 3
        %vm742 = vcmp.lt.s32.totalorder %v720, 4
        %v743 = vsel %vm739, %v723, %v726
        %v744 = vsel %vm742, %v732, 2102212464
        %v745 = vsel %vm741, %v729, %v744
        %v746 = vsel %vm740, %v743, %v745
        %v747 = vsel %vm739, %v726, %v729
        %v748 = vsel %vm742, %v735, 920167782
        %v749 = vsel %vm741, %v732, %v748
        %v750 = vsel %vm740, %v747, %v749
        %v751 = vsel %vm739, %v729, %v732
        %v752 = vsel %vm742, %v738, 1326507024
        %v753 = vsel %vm741, %v735, %v752
        %v754 = vsel %vm740, %v751, %v753
        %v755 = vshll.u32 %v715, 8
        %v756 = vmul.u32.u64.compose %v755, %v754
        %v757 = vextract.low.u32 %v756
        %v758 = vextract.high.u32 %v756
        %v759 = vmul.u32.u64.compose %v755, %v750
        %v760 = vextract.low.u32 %v759
        %v761 = vextract.high.u32 %v759
        %v762 = vmul.u32 %v755, %v746
        %v763 = vadd.s32 %v758, %v760
        %vm764 = vc.u32 %v758, %v760
        %v765 = vadd.s32 %v761, 1
        %v766 = vsel %vm764, %v765, %v761
        %v767 = vadd.s32 %v762, %v766
        %v768 = vadd.s32 %v767, 536870912
        %v769 = vshrl.u32 %v768, 30
        %v770 = vshll.u32 %v769, 30
        %v771 = vsub.s32 %v767, %v770
        %vm772 = vcmp.lt.s32.totalorder %v771, 0
        %v773 = vsub.s32 0, %v771
        %v774 = vsel %vm772, %v773, %v771
        %v775 = vclz %v774
        %v776 = vsub.s32 %v775, 2
        %vm777 = vcmp.gt.s32.totalorder 0, %v776
        %v778 = vsel %vm777, 0, %v776
        %v779 = vsub.s32 32, %v778
        %v780 = vshll.u32 %v771, %v778
        %v781 = vshrl.u32 %v763, %v779
        %v782 = vor.u32 %v780, %v781
        %v783 = vsub.s32 4294967266, %v778
        %v784 = vadd.s32 %v783, 127
        %v785 = vshll.u32 %v784, 23
        %v786 = vor.u32 4788187, %v785
        %v787 = vand.u32 2147483647, %v786
        %v789 = vcvt.s32.f32 %v782
        %v790 = vmul.f32 %v789, %v787
        %v791 = vxor.u32 %v790, 2147483648
        %v792 = vsel %vm709, %v791, %v790
        %v793 = vsub.s32 4, %v769
        %v794 = vsel %vm709, %v793, %v769
        %v795 = vsel %vm708, %v699, %v792
        %v796 = vsel %vm708, 0, %v794
        %v797 = vcosq.f32.pop %v795
        %v798 = vsinq.f32.pop %v795
        %vm799 = vweird.f32 %v699
        %v800 = vand.u32 %v796, 3
        %vm801 = vcmp.lt.s32.totalorder %v800, 2
        %vm802 = vcmp.eq.s32.totalorder %v800, 0
        %v803 = vxor.u32 %v798, 2147483648
        %v804 = vsel %vm802, %v797, %v803
        %vm805 = vcmp.eq.s32.totalorder %v800, 2
        %v806 = vxor.u32 %v797, 2147483648
        %v807 = vsel %vm805, %v806, %v798
        %v808 = vsel %vm801, %v804, %v807
        %v809 = vsel %vm799, nan, %v808
        %v810 = vand.u32 2147483647, %v700
        %vm811 = vcmp.le.f32.partialorder %v810, 0.7853982
        %vm812 = vcmp.lt.s32.totalorder %v700, 0
        %v813 = vand.u32 %v700, 2139095040
        %v814 = vshrl.u32 %v813, 23
        %v815 = vsub.s32 %v814, 127
        %v816 = vand.u32 2147483647, %v700
        %v817 = vand.u32 %v816, 8388607
        %v818 = vor.u32 %v817, 8388608
        %v819 = vsub.s32 0, %v818
        %v820 = vadd.s32 %v815, 1
        %vm821 = vcmp.gt.s32.totalorder %v820, 0
        %v822 = vsel %vm821, %v820, 0
        %v823 = vshrl.u32 %v822, 5
        %v824 = vand.u32 %v822, 31
        %v825 = vsub.s32 32, %v824
        %v826 = vshrl.u32 683565275, %v825
        %v827 = vshll.u32 683565275, %v824
        %v828 = vshrl.u32 2475754826, %v825
        %v829 = vor.u32 %v827, %v828
        %v830 = vshll.u32 2475754826, %v824
        %v831 = vshrl.u32 2131351028, %v825
        %v832 = vor.u32 %v830, %v831
        %v833 = vshll.u32 2131351028, %v824
        %v834 = vshrl.u32 2102212464, %v825
        %v835 = vor.u32 %v833, %v834
        %v836 = vshll.u32 2102212464, %v824
        %v837 = vshrl.u32 920167782, %v825
        %v838 = vor.u32 %v836, %v837
        %v839 = vshll.u32 920167782, %v824
        %v840 = vshrl.u32 1326507024, %v825
        %v841 = vor.u32 %v839, %v840
        %vm842 = vcmp.lt.s32.totalorder %v823, 1
        %vm843 = vcmp.lt.s32.totalorder %v823, 2
        %vm844 = vcmp.lt.s32.totalorder %v823, 3
        %vm845 = vcmp.lt.s32.totalorder %v823, 4
        %v846 = vsel %vm842, %v826, %v829
        %v847 = vsel %vm845, %v835, 2102212464
        %v848 = vsel %vm844, %v832, %v847
        %v849 = vsel %vm843, %v846, %v848
        %v850 = vsel %vm842, %v829, %v832
        %v851 = vsel %vm845, %v838, 920167782
        %v852 = vsel %vm844, %v835, %v851
        %v853 = vsel %vm843, %v850, %v852
        %v854 = vsel %vm842, %v832, %v835
        %v855 = vsel %vm845, %v841, 1326507024
        %v856 = vsel %vm844, %v838, %v855
        %v857 = vsel %vm843, %v854, %v856
        %v858 = vshll.u32 %v818, 8
        %v859 = vmul.u32.u64.compose %v858, %v857
        %v860 = vextract.low.u32 %v859
        %v861 = vextract.high.u32 %v859
        %v862 = vmul.u32.u64.compose %v858, %v853
        %v863 = vextract.low.u32 %v862
        %v864 = vextract.high.u32 %v862
        %v865 = vmul.u32 %v858, %v849
        %v866 = vadd.s32 %v861, %v863
        %vm867 = vc.u32 %v861, %v863
        %v868 = vadd.s32 %v864, 1
        %v869 = vsel %vm867, %v868, %v864
        %v870 = vadd.s32 %v865, %v869
        %v871 = vadd.s32 %v870, 536870912
        %v872 = vshrl.u32 %v871, 30
        %v873 = vshll.u32 %v872, 30
        %v874 = vsub.s32 %v870, %v873
        %vm875 = vcmp.lt.s32.totalorder %v874, 0
        %v876 = vsub.s32 0, %v874
        %v877 = vsel %vm875, %v876, %v874
        %v878 = vclz %v877
        %v879 = vsub.s32 %v878, 2
        %vm880 = vcmp.gt.s32.totalorder 0, %v879
        %v881 = vsel %vm880, 0, %v879
        %v882 = vsub.s32 32, %v881
        %v883 = vshll.u32 %v874, %v881
        %v884 = vshrl.u32 %v866, %v882
        %v885 = vor.u32 %v883, %v884
        %v886 = vsub.s32 4294967266, %v881
        %v887 = vadd.s32 %v886, 127
        %v888 = vshll.u32 %v887, 23
        %v889 = vor.u32 4788187, %v888
        %v890 = vand.u32 2147483647, %v889
        %v892 = vcvt.s32.f32 %v885
        %v893 = vmul.f32 %v892, %v890
        %v894 = vxor.u32 %v893, 2147483648
        %v895 = vsel %vm812, %v894, %v893
        %v896 = vsub.s32 4, %v872
        %v897 = vsel %vm812, %v896, %v872
        %v898 = vsel %vm811, %v700, %v895
        %v899 = vsel %vm811, 0, %v897
        %v900 = vcosq.f32.pop %v898
        %v901 = vsinq.f32.pop %v898
        %vm902 = vweird.f32 %v700
        %v903 = vand.u32 %v899, 3
        %vm904 = vcmp.lt.s32.totalorder %v903, 2
        %vm905 = vcmp.eq.s32.totalorder %v903, 0
        %v906 = vxor.u32 %v901, 2147483648
        %v907 = vsel %vm905, %v900, %v906
        %vm908 = vcmp.eq.s32.totalorder %v903, 2
        %v909 = vxor.u32 %v900, 2147483648
        %v910 = vsel %vm908, %v909, %v901
        %v911 = vsel %vm904, %v907, %v910
        %v912 = vsel %vm902, nan, %v911
        %v913 = vand.u32 2147483647, %v701
        %vm914 = vcmp.le.f32.partialorder %v913, 0.7853982
        %vm915 = vcmp.lt.s32.totalorder %v701, 0
        %v916 = vand.u32 %v701, 2139095040
        %v917 = vshrl.u32 %v916, 23
        %v918 = vsub.s32 %v917, 127
        %v919 = vand.u32 2147483647, %v701
        %v920 = vand.u32 %v919, 8388607
        %v921 = vor.u32 %v920, 8388608
        %v922 = vsub.s32 0, %v921
        %v923 = vadd.s32 %v918, 1
        %vm924 = vcmp.gt.s32.totalorder %v923, 0
        %v925 = vsel %vm924, %v923, 0
        %v926 = vshrl.u32 %v925, 5
        %v927 = vand.u32 %v925, 31
        %v928 = vsub.s32 32, %v927
        %v929 = vshrl.u32 683565275, %v928
        %v930 = vshll.u32 683565275, %v927
        %v931 = vshrl.u32 2475754826, %v928
        %v932 = vor.u32 %v930, %v931
        %v933 = vshll.u32 2475754826, %v927
        %v934 = vshrl.u32 2131351028, %v928
        %v935 = vor.u32 %v933, %v934
        %v936 = vshll.u32 2131351028, %v927
        %v937 = vshrl.u32 2102212464, %v928
        %v938 = vor.u32 %v936, %v937
        %v939 = vshll.u32 2102212464, %v927
        %v940 = vshrl.u32 920167782, %v928
        %v941 = vor.u32 %v939, %v940
        %v942 = vshll.u32 920167782, %v927
        %v943 = vshrl.u32 1326507024, %v928
        %v944 = vor.u32 %v942, %v943
        %vm945 = vcmp.lt.s32.totalorder %v926, 1
        %vm946 = vcmp.lt.s32.totalorder %v926, 2
        %vm947 = vcmp.lt.s32.totalorder %v926, 3
        %vm948 = vcmp.lt.s32.totalorder %v926, 4
        %v949 = vsel %vm945, %v929, %v932
        %v950 = vsel %vm948, %v938, 2102212464
        %v951 = vsel %vm947, %v935, %v950
        %v952 = vsel %vm946, %v949, %v951
        %v953 = vsel %vm945, %v932, %v935
        %v954 = vsel %vm948, %v941, 920167782
        %v955 = vsel %vm947, %v938, %v954
        %v956 = vsel %vm946, %v953, %v955
        %v957 = vsel %vm945, %v935, %v938
        %v958 = vsel %vm948, %v944, 1326507024
        %v959 = vsel %vm947, %v941, %v958
        %v960 = vsel %vm946, %v957, %v959
        %v961 = vshll.u32 %v921, 8
        %v962 = vmul.u32.u64.compose %v961, %v960
        %v963 = vextract.low.u32 %v962
        %v964 = vextract.high.u32 %v962
        %v965 = vmul.u32.u64.compose %v961, %v956
        %v966 = vextract.low.u32 %v965
        %v967 = vextract.high.u32 %v965
        %v968 = vmul.u32 %v961, %v952
        %v969 = vadd.s32 %v964, %v966
        %vm970 = vc.u32 %v964, %v966
        %v971 = vadd.s32 %v967, 1
        %v972 = vsel %vm970, %v971, %v967
        %v973 = vadd.s32 %v968, %v972
        %v974 = vadd.s32 %v973, 536870912
        %v975 = vshrl.u32 %v974, 30
        %v976 = vshll.u32 %v975, 30
        %v977 = vsub.s32 %v973, %v976
        %vm978 = vcmp.lt.s32.totalorder %v977, 0
        %v979 = vsub.s32 0, %v977
        %v980 = vsel %vm978, %v979, %v977
        %v981 = vclz %v980
        %v982 = vsub.s32 %v981, 2
        %vm983 = vcmp.gt.s32.totalorder 0, %v982
        %v984 = vsel %vm983, 0, %v982
        %v985 = vsub.s32 32, %v984
        %v986 = vshll.u32 %v977, %v984
        %v987 = vshrl.u32 %v969, %v985
        %v988 = vor.u32 %v986, %v987
        %v989 = vsub.s32 4294967266, %v984
        %v990 = vadd.s32 %v989, 127
        %v991 = vshll.u32 %v990, 23
        %v992 = vor.u32 4788187, %v991
        %v993 = vand.u32 2147483647, %v992
        %v995 = vcvt.s32.f32 %v988
        %v996 = vmul.f32 %v995, %v993
        %v997 = vxor.u32 %v996, 2147483648
        %v998 = vsel %vm915, %v997, %v996
        %v999 = vsub.s32 4, %v975
        %v1000 = vsel %vm915, %v999, %v975
        %v1001 = vsel %vm914, %v701, %v998
        %v1002 = vsel %vm914, 0, %v1000
        %v1003 = vcosq.f32.pop %v1001
        %v1004 = vsinq.f32.pop %v1001
        %vm1005 = vweird.f32 %v701
        %v1006 = vand.u32 %v1002, 3
        %vm1007 = vcmp.lt.s32.totalorder %v1006, 2
        %vm1008 = vcmp.eq.s32.totalorder %v1006, 0
        %v1009 = vxor.u32 %v1004, 2147483648
        %v1010 = vsel %vm1008, %v1003, %v1009
        %vm1011 = vcmp.eq.s32.totalorder %v1006, 2
        %v1012 = vxor.u32 %v1003, 2147483648
        %v1013 = vsel %vm1011, %v1012, %v1004
        %v1014 = vsel %vm1007, %v1010, %v1013
        %v1015 = vsel %vm1005, nan, %v1014
        %v1016 = vand.u32 2147483647, %v702
        %vm1017 = vcmp.le.f32.partialorder %v1016, 0.7853982
        %vm1018 = vcmp.lt.s32.totalorder %v702, 0
        %v1019 = vand.u32 %v702, 2139095040
        %v1020 = vshrl.u32 %v1019, 23
        %v1021 = vsub.s32 %v1020, 127
        %v1022 = vand.u32 2147483647, %v702
        %v1023 = vand.u32 %v1022, 8388607
        %v1024 = vor.u32 %v1023, 8388608
        %v1025 = vsub.s32 0, %v1024
        %v1026 = vadd.s32 %v1021, 1
        %vm1027 = vcmp.gt.s32.totalorder %v1026, 0
        %v1028 = vsel %vm1027, %v1026, 0
        %v1029 = vshrl.u32 %v1028, 5
        %v1030 = vand.u32 %v1028, 31
        %v1031 = vsub.s32 32, %v1030
        %v1032 = vshrl.u32 683565275, %v1031
        %v1033 = vshll.u32 683565275, %v1030
        %v1034 = vshrl.u32 2475754826, %v1031
        %v1035 = vor.u32 %v1033, %v1034
        %v1036 = vshll.u32 2475754826, %v1030
        %v1037 = vshrl.u32 2131351028, %v1031
        %v1038 = vor.u32 %v1036, %v1037
        %v1039 = vshll.u32 2131351028, %v1030
        %v1040 = vshrl.u32 2102212464, %v1031
        %v1041 = vor.u32 %v1039, %v1040
        %v1042 = vshll.u32 2102212464, %v1030
        %v1043 = vshrl.u32 920167782, %v1031
        %v1044 = vor.u32 %v1042, %v1043
        %v1045 = vshll.u32 920167782, %v1030
        %v1046 = vshrl.u32 1326507024, %v1031
        %v1047 = vor.u32 %v1045, %v1046
        %vm1048 = vcmp.lt.s32.totalorder %v1029, 1
        %vm1049 = vcmp.lt.s32.totalorder %v1029, 2
        %vm1050 = vcmp.lt.s32.totalorder %v1029, 3
        %vm1051 = vcmp.lt.s32.totalorder %v1029, 4
        %v1052 = vsel %vm1048, %v1032, %v1035
        %v1053 = vsel %vm1051, %v1041, 2102212464
        %v1054 = vsel %vm1050, %v1038, %v1053
        %v1055 = vsel %vm1049, %v1052, %v1054
        %v1056 = vsel %vm1048, %v1035, %v1038
        %v1057 = vsel %vm1051, %v1044, 920167782
        %v1058 = vsel %vm1050, %v1041, %v1057
        %v1059 = vsel %vm1049, %v1056, %v1058
        %v1060 = vsel %vm1048, %v1038, %v1041
        %v1061 = vsel %vm1051, %v1047, 1326507024
        %v1062 = vsel %vm1050, %v1044, %v1061
        %v1063 = vsel %vm1049, %v1060, %v1062
        %v1064 = vshll.u32 %v1024, 8
        %v1065 = vmul.u32.u64.compose %v1064, %v1063
        %v1066 = vextract.low.u32 %v1065
        %v1067 = vextract.high.u32 %v1065
        %v1068 = vmul.u32.u64.compose %v1064, %v1059
        %v1069 = vextract.low.u32 %v1068
        %v1070 = vextract.high.u32 %v1068
        %v1071 = vmul.u32 %v1064, %v1055
        %v1072 = vadd.s32 %v1067, %v1069
        %vm1073 = vc.u32 %v1067, %v1069
        %v1074 = vadd.s32 %v1070, 1
        %v1075 = vsel %vm1073, %v1074, %v1070
        %v1076 = vadd.s32 %v1071, %v1075
        %v1077 = vadd.s32 %v1076, 536870912
        %v1078 = vshrl.u32 %v1077, 30
        %v1079 = vshll.u32 %v1078, 30
        %v1080 = vsub.s32 %v1076, %v1079
        %vm1081 = vcmp.lt.s32.totalorder %v1080, 0
        %v1082 = vsub.s32 0, %v1080
        %v1083 = vsel %vm1081, %v1082, %v1080
        %v1084 = vclz %v1083
        %v1085 = vsub.s32 %v1084, 2
        %vm1086 = vcmp.gt.s32.totalorder 0, %v1085
        %v1087 = vsel %vm1086, 0, %v1085
        %v1088 = vsub.s32 32, %v1087
        %v1089 = vshll.u32 %v1080, %v1087
        %v1090 = vshrl.u32 %v1072, %v1088
        %v1091 = vor.u32 %v1089, %v1090
        %v1092 = vsub.s32 4294967266, %v1087
        %v1093 = vadd.s32 %v1092, 127
        %v1094 = vshll.u32 %v1093, 23
        %v1095 = vor.u32 4788187, %v1094
        %v1096 = vand.u32 2147483647, %v1095
        %v1098 = vcvt.s32.f32 %v1091
        %v1099 = vmul.f32 %v1098, %v1096
        %v1100 = vxor.u32 %v1099, 2147483648
        %v1101 = vsel %vm1018, %v1100, %v1099
        %v1102 = vsub.s32 4, %v1078
        %v1103 = vsel %vm1018, %v1102, %v1078
        %v1104 = vsel %vm1017, %v702, %v1101
        %v1105 = vsel %vm1017, 0, %v1103
        %v1106 = vcosq.f32.pop %v1104
        %v1107 = vsinq.f32.pop %v1104
        %vm1108 = vweird.f32 %v702
        %v1109 = vand.u32 %v1105, 3
        %vm1110 = vcmp.lt.s32.totalorder %v1109, 2
        %vm1111 = vcmp.eq.s32.totalorder %v1109, 0
        %v1112 = vxor.u32 %v1107, 2147483648
        %v1113 = vsel %vm1111, %v1106, %v1112
        %vm1114 = vcmp.eq.s32.totalorder %v1109, 2
        %v1115 = vxor.u32 %v1106, 2147483648
        %v1116 = vsel %vm1114, %v1115, %v1107
        %v1117 = vsel %vm1110, %v1113, %v1116
        %v1118 = vsel %vm1108, nan, %v1117
        %v1119 = vand.u32 2147483647, %v703
        %vm1120 = vcmp.le.f32.partialorder %v1119, 0.7853982
        %vm1121 = vcmp.lt.s32.totalorder %v703, 0
        %v1122 = vand.u32 %v703, 2139095040
        %v1123 = vshrl.u32 %v1122, 23
        %v1124 = vsub.s32 %v1123, 127
        %v1125 = vand.u32 2147483647, %v703
        %v1126 = vand.u32 %v1125, 8388607
        %v1127 = vor.u32 %v1126, 8388608
        %v1128 = vsub.s32 0, %v1127
        %v1129 = vadd.s32 %v1124, 1
        %vm1130 = vcmp.gt.s32.totalorder %v1129, 0
        %v1131 = vsel %vm1130, %v1129, 0
        %v1132 = vshrl.u32 %v1131, 5
        %v1133 = vand.u32 %v1131, 31
        %v1134 = vsub.s32 32, %v1133
        %v1135 = vshrl.u32 683565275, %v1134
        %v1136 = vshll.u32 683565275, %v1133
        %v1137 = vshrl.u32 2475754826, %v1134
        %v1138 = vor.u32 %v1136, %v1137
        %v1139 = vshll.u32 2475754826, %v1133
        %v1140 = vshrl.u32 2131351028, %v1134
        %v1141 = vor.u32 %v1139, %v1140
        %v1142 = vshll.u32 2131351028, %v1133
        %v1143 = vshrl.u32 2102212464, %v1134
        %v1144 = vor.u32 %v1142, %v1143
        %v1145 = vshll.u32 2102212464, %v1133
        %v1146 = vshrl.u32 920167782, %v1134
        %v1147 = vor.u32 %v1145, %v1146
        %v1148 = vshll.u32 920167782, %v1133
        %v1149 = vshrl.u32 1326507024, %v1134
        %v1150 = vor.u32 %v1148, %v1149
        %vm1151 = vcmp.lt.s32.totalorder %v1132, 1
        %vm1152 = vcmp.lt.s32.totalorder %v1132, 2
        %vm1153 = vcmp.lt.s32.totalorder %v1132, 3
        %vm1154 = vcmp.lt.s32.totalorder %v1132, 4
        %v1155 = vsel %vm1151, %v1135, %v1138
        %v1156 = vsel %vm1154, %v1144, 2102212464
        %v1157 = vsel %vm1153, %v1141, %v1156
        %v1158 = vsel %vm1152, %v1155, %v1157
        %v1159 = vsel %vm1151, %v1138, %v1141
        %v1160 = vsel %vm1154, %v1147, 920167782
        %v1161 = vsel %vm1153, %v1144, %v1160
        %v1162 = vsel %vm1152, %v1159, %v1161
        %v1163 = vsel %vm1151, %v1141, %v1144
        %v1164 = vsel %vm1154, %v1150, 1326507024
        %v1165 = vsel %vm1153, %v1147, %v1164
        %v1166 = vsel %vm1152, %v1163, %v1165
        %v1167 = vshll.u32 %v1127, 8
        %v1168 = vmul.u32.u64.compose %v1167, %v1166
        %v1169 = vextract.low.u32 %v1168
        %v1170 = vextract.high.u32 %v1168
        %v1171 = vmul.u32.u64.compose %v1167, %v1162
        %v1172 = vextract.low.u32 %v1171
        %v1173 = vextract.high.u32 %v1171
        %v1174 = vmul.u32 %v1167, %v1158
        %v1175 = vadd.s32 %v1170, %v1172
        %vm1176 = vc.u32 %v1170, %v1172
        %v1177 = vadd.s32 %v1173, 1
        %v1178 = vsel %vm1176, %v1177, %v1173
        %v1179 = vadd.s32 %v1174, %v1178
        %v1180 = vadd.s32 %v1179, 536870912
        %v1181 = vshrl.u32 %v1180, 30
        %v1182 = vshll.u32 %v1181, 30
        %v1183 = vsub.s32 %v1179, %v1182
        %vm1184 = vcmp.lt.s32.totalorder %v1183, 0
        %v1185 = vsub.s32 0, %v1183
        %v1186 = vsel %vm1184, %v1185, %v1183
        %v1187 = vclz %v1186
        %v1188 = vsub.s32 %v1187, 2
        %vm1189 = vcmp.gt.s32.totalorder 0, %v1188
        %v1190 = vsel %vm1189, 0, %v1188
        %v1191 = vsub.s32 32, %v1190
        %v1192 = vshll.u32 %v1183, %v1190
        %v1193 = vshrl.u32 %v1175, %v1191
        %v1194 = vor.u32 %v1192, %v1193
        %v1195 = vsub.s32 4294967266, %v1190
        %v1196 = vadd.s32 %v1195, 127
        %v1197 = vshll.u32 %v1196, 23
        %v1198 = vor.u32 4788187, %v1197
        %v1199 = vand.u32 2147483647, %v1198
        %v1201 = vcvt.s32.f32 %v1194
        %v1202 = vmul.f32 %v1201, %v1199
        %v1203 = vxor.u32 %v1202, 2147483648
        %v1204 = vsel %vm1121, %v1203, %v1202
        %v1205 = vsub.s32 4, %v1181
        %v1206 = vsel %vm1121, %v1205, %v1181
        %v1207 = vsel %vm1120, %v703, %v1204
        %v1208 = vsel %vm1120, 0, %v1206
        %v1209 = vcosq.f32.pop %v1207
        %v1210 = vsinq.f32.pop %v1207
        %vm1211 = vweird.f32 %v703
        %v1212 = vand.u32 %v1208, 3
        %vm1213 = vcmp.lt.s32.totalorder %v1212, 2
        %vm1214 = vcmp.eq.s32.totalorder %v1212, 0
        %v1215 = vxor.u32 %v1210, 2147483648
        %v1216 = vsel %vm1214, %v1209, %v1215
        %vm1217 = vcmp.eq.s32.totalorder %v1212, 2
        %v1218 = vxor.u32 %v1209, 2147483648
        %v1219 = vsel %vm1217, %v1218, %v1210
        %v1220 = vsel %vm1213, %v1216, %v1219
        %v1221 = vsel %vm1211, nan, %v1220
        %v1222 = vand.u32 2147483647, %v704
        %vm1223 = vcmp.le.f32.partialorder %v1222, 0.7853982
        %vm1224 = vcmp.lt.s32.totalorder %v704, 0
        %v1225 = vand.u32 %v704, 2139095040
        %v1226 = vshrl.u32 %v1225, 23
        %v1227 = vsub.s32 %v1226, 127
        %v1228 = vand.u32 2147483647, %v704
        %v1229 = vand.u32 %v1228, 8388607
        %v1230 = vor.u32 %v1229, 8388608
        %v1231 = vsub.s32 0, %v1230
        %v1232 = vadd.s32 %v1227, 1
        %vm1233 = vcmp.gt.s32.totalorder %v1232, 0
        %v1234 = vsel %vm1233, %v1232, 0
        %v1235 = vshrl.u32 %v1234, 5
        %v1236 = vand.u32 %v1234, 31
        %v1237 = vsub.s32 32, %v1236
        %v1238 = vshrl.u32 683565275, %v1237
        %v1239 = vshll.u32 683565275, %v1236
        %v1240 = vshrl.u32 2475754826, %v1237
        %v1241 = vor.u32 %v1239, %v1240
        %v1242 = vshll.u32 2475754826, %v1236
        %v1243 = vshrl.u32 2131351028, %v1237
        %v1244 = vor.u32 %v1242, %v1243
        %v1245 = vshll.u32 2131351028, %v1236
        %v1246 = vshrl.u32 2102212464, %v1237
        %v1247 = vor.u32 %v1245, %v1246
        %v1248 = vshll.u32 2102212464, %v1236
        %v1249 = vshrl.u32 920167782, %v1237
        %v1250 = vor.u32 %v1248, %v1249
        %v1251 = vshll.u32 920167782, %v1236
        %v1252 = vshrl.u32 1326507024, %v1237
        %v1253 = vor.u32 %v1251, %v1252
        %vm1254 = vcmp.lt.s32.totalorder %v1235, 1
        %vm1255 = vcmp.lt.s32.totalorder %v1235, 2
        %vm1256 = vcmp.lt.s32.totalorder %v1235, 3
        %vm1257 = vcmp.lt.s32.totalorder %v1235, 4
        %v1258 = vsel %vm1254, %v1238, %v1241
        %v1259 = vsel %vm1257, %v1247, 2102212464
        %v1260 = vsel %vm1256, %v1244, %v1259
        %v1261 = vsel %vm1255, %v1258, %v1260
        %v1262 = vsel %vm1254, %v1241, %v1244
        %v1263 = vsel %vm1257, %v1250, 920167782
        %v1264 = vsel %vm1256, %v1247, %v1263
        %v1265 = vsel %vm1255, %v1262, %v1264
        %v1266 = vsel %vm1254, %v1244, %v1247
        %v1267 = vsel %vm1257, %v1253, 1326507024
        %v1268 = vsel %vm1256, %v1250, %v1267
        %v1269 = vsel %vm1255, %v1266, %v1268
        %v1270 = vshll.u32 %v1230, 8
        %v1271 = vmul.u32.u64.compose %v1270, %v1269
        %v1272 = vextract.low.u32 %v1271
        %v1273 = vextract.high.u32 %v1271
        %v1274 = vmul.u32.u64.compose %v1270, %v1265
        %v1275 = vextract.low.u32 %v1274
        %v1276 = vextract.high.u32 %v1274
        %v1277 = vmul.u32 %v1270, %v1261
        %v1278 = vadd.s32 %v1273, %v1275
        %vm1279 = vc.u32 %v1273, %v1275
        %v1280 = vadd.s32 %v1276, 1
        %v1281 = vsel %vm1279, %v1280, %v1276
        %v1282 = vadd.s32 %v1277, %v1281
        %v1283 = vadd.s32 %v1282, 536870912
        %v1284 = vshrl.u32 %v1283, 30
        %v1285 = vshll.u32 %v1284, 30
        %v1286 = vsub.s32 %v1282, %v1285
        %vm1287 = vcmp.lt.s32.totalorder %v1286, 0
        %v1288 = vsub.s32 0, %v1286
        %v1289 = vsel %vm1287, %v1288, %v1286
        %v1290 = vclz %v1289
        %v1291 = vsub.s32 %v1290, 2
        %vm1292 = vcmp.gt.s32.totalorder 0, %v1291
        %v1293 = vsel %vm1292, 0, %v1291
        %v1294 = vsub.s32 32, %v1293
        %v1295 = vshll.u32 %v1286, %v1293
        %v1296 = vshrl.u32 %v1278, %v1294
        %v1297 = vor.u32 %v1295, %v1296
        %v1298 = vsub.s32 4294967266, %v1293
        %v1299 = vadd.s32 %v1298, 127
        %v1300 = vshll.u32 %v1299, 23
        %v1301 = vor.u32 4788187, %v1300
        %v1302 = vand.u32 2147483647, %v1301
        %v1304 = vcvt.s32.f32 %v1297
        %v1305 = vmul.f32 %v1304, %v1302
        %v1306 = vxor.u32 %v1305, 2147483648
        %v1307 = vsel %vm1224, %v1306, %v1305
        %v1308 = vsub.s32 4, %v1284
        %v1309 = vsel %vm1224, %v1308, %v1284
        %v1310 = vsel %vm1223, %v704, %v1307
        %v1311 = vsel %vm1223, 0, %v1309
        %v1312 = vcosq.f32.pop %v1310
        %v1313 = vsinq.f32.pop %v1310
        %vm1314 = vweird.f32 %v704
        %v1315 = vand.u32 %v1311, 3
        %vm1316 = vcmp.lt.s32.totalorder %v1315, 2
        %vm1317 = vcmp.eq.s32.totalorder %v1315, 0
        %v1318 = vxor.u32 %v1313, 2147483648
        %v1319 = vsel %vm1317, %v1312, %v1318
        %vm1320 = vcmp.eq.s32.totalorder %v1315, 2
        %v1321 = vxor.u32 %v1312, 2147483648
        %v1322 = vsel %vm1320, %v1321, %v1313
        %v1323 = vsel %vm1316, %v1319, %v1322
        %v1324 = vsel %vm1314, nan, %v1323
        %v1325 = vand.u32 2147483647, %v705
        %vm1326 = vcmp.le.f32.partialorder %v1325, 0.7853982
        %vm1327 = vcmp.lt.s32.totalorder %v705, 0
        %v1328 = vand.u32 %v705, 2139095040
        %v1329 = vshrl.u32 %v1328, 23
        %v1330 = vsub.s32 %v1329, 127
        %v1331 = vand.u32 2147483647, %v705
        %v1332 = vand.u32 %v1331, 8388607
        %v1333 = vor.u32 %v1332, 8388608
        %v1334 = vsub.s32 0, %v1333
        %v1335 = vadd.s32 %v1330, 1
        %vm1336 = vcmp.gt.s32.totalorder %v1335, 0
        %v1337 = vsel %vm1336, %v1335, 0
        %v1338 = vshrl.u32 %v1337, 5
        %v1339 = vand.u32 %v1337, 31
        %v1340 = vsub.s32 32, %v1339
        %v1341 = vshrl.u32 683565275, %v1340
        %v1342 = vshll.u32 683565275, %v1339
        %v1343 = vshrl.u32 2475754826, %v1340
        %v1344 = vor.u32 %v1342, %v1343
        %v1345 = vshll.u32 2475754826, %v1339
        %v1346 = vshrl.u32 2131351028, %v1340
        %v1347 = vor.u32 %v1345, %v1346
        %v1348 = vshll.u32 2131351028, %v1339
        %v1349 = vshrl.u32 2102212464, %v1340
        %v1350 = vor.u32 %v1348, %v1349
        %v1351 = vshll.u32 2102212464, %v1339
        %v1352 = vshrl.u32 920167782, %v1340
        %v1353 = vor.u32 %v1351, %v1352
        %v1354 = vshll.u32 920167782, %v1339
        %v1355 = vshrl.u32 1326507024, %v1340
        %v1356 = vor.u32 %v1354, %v1355
        %vm1357 = vcmp.lt.s32.totalorder %v1338, 1
        %vm1358 = vcmp.lt.s32.totalorder %v1338, 2
        %vm1359 = vcmp.lt.s32.totalorder %v1338, 3
        %vm1360 = vcmp.lt.s32.totalorder %v1338, 4
        %v1361 = vsel %vm1357, %v1341, %v1344
        %v1362 = vsel %vm1360, %v1350, 2102212464
        %v1363 = vsel %vm1359, %v1347, %v1362
        %v1364 = vsel %vm1358, %v1361, %v1363
        %v1365 = vsel %vm1357, %v1344, %v1347
        %v1366 = vsel %vm1360, %v1353, 920167782
        %v1367 = vsel %vm1359, %v1350, %v1366
        %v1368 = vsel %vm1358, %v1365, %v1367
        %v1369 = vsel %vm1357, %v1347, %v1350
        %v1370 = vsel %vm1360, %v1356, 1326507024
        %v1371 = vsel %vm1359, %v1353, %v1370
        %v1372 = vsel %vm1358, %v1369, %v1371
        %v1373 = vshll.u32 %v1333, 8
        %v1374 = vmul.u32.u64.compose %v1373, %v1372
        %v1375 = vextract.low.u32 %v1374
        %v1376 = vextract.high.u32 %v1374
        %v1377 = vmul.u32.u64.compose %v1373, %v1368
        %v1378 = vextract.low.u32 %v1377
        %v1379 = vextract.high.u32 %v1377
        %v1380 = vmul.u32 %v1373, %v1364
        %v1381 = vadd.s32 %v1376, %v1378
        %vm1382 = vc.u32 %v1376, %v1378
        %v1383 = vadd.s32 %v1379, 1
        %v1384 = vsel %vm1382, %v1383, %v1379
        %v1385 = vadd.s32 %v1380, %v1384
        %v1386 = vadd.s32 %v1385, 536870912
        %v1387 = vshrl.u32 %v1386, 30
        %v1388 = vshll.u32 %v1387, 30
        %v1389 = vsub.s32 %v1385, %v1388
        %vm1390 = vcmp.lt.s32.totalorder %v1389, 0
        %v1391 = vsub.s32 0, %v1389
        %v1392 = vsel %vm1390, %v1391, %v1389
        %v1393 = vclz %v1392
        %v1394 = vsub.s32 %v1393, 2
        %vm1395 = vcmp.gt.s32.totalorder 0, %v1394
        %v1396 = vsel %vm1395, 0, %v1394
        %v1397 = vsub.s32 32, %v1396
        %v1398 = vshll.u32 %v1389, %v1396
        %v1399 = vshrl.u32 %v1381, %v1397
        %v1400 = vor.u32 %v1398, %v1399
        %v1401 = vsub.s32 4294967266, %v1396
        %v1402 = vadd.s32 %v1401, 127
        %v1403 = vshll.u32 %v1402, 23
        %v1404 = vor.u32 4788187, %v1403
        %v1405 = vand.u32 2147483647, %v1404
        %v1407 = vcvt.s32.f32 %v1400
        %v1408 = vmul.f32 %v1407, %v1405
        %v1409 = vxor.u32 %v1408, 2147483648
        %v1410 = vsel %vm1327, %v1409, %v1408
        %v1411 = vsub.s32 4, %v1387
        %v1412 = vsel %vm1327, %v1411, %v1387
        %v1413 = vsel %vm1326, %v705, %v1410
        %v1414 = vsel %vm1326, 0, %v1412
        %v1415 = vcosq.f32.pop %v1413
        %v1416 = vsinq.f32.pop %v1413
        %vm1417 = vweird.f32 %v705
        %v1418 = vand.u32 %v1414, 3
        %vm1419 = vcmp.lt.s32.totalorder %v1418, 2
        %vm1420 = vcmp.eq.s32.totalorder %v1418, 0
        %v1421 = vxor.u32 %v1416, 2147483648
        %v1422 = vsel %vm1420, %v1415, %v1421
        %vm1423 = vcmp.eq.s32.totalorder %v1418, 2
        %v1424 = vxor.u32 %v1415, 2147483648
        %v1425 = vsel %vm1423, %v1424, %v1416
        %v1426 = vsel %vm1419, %v1422, %v1425
        %v1427 = vsel %vm1417, nan, %v1426
        %v1428 = vand.u32 2147483647, %v706
        %vm1429 = vcmp.le.f32.partialorder %v1428, 0.7853982
        %vm1430 = vcmp.lt.s32.totalorder %v706, 0
        %v1431 = vand.u32 %v706, 2139095040
        %v1432 = vshrl.u32 %v1431, 23
        %v1433 = vsub.s32 %v1432, 127
        %v1434 = vand.u32 2147483647, %v706
        %v1435 = vand.u32 %v1434, 8388607
        %v1436 = vor.u32 %v1435, 8388608
        %v1437 = vsub.s32 0, %v1436
        %v1438 = vadd.s32 %v1433, 1
        %vm1439 = vcmp.gt.s32.totalorder %v1438, 0
        %v1440 = vsel %vm1439, %v1438, 0
        %v1441 = vshrl.u32 %v1440, 5
        %v1442 = vand.u32 %v1440, 31
        %v1443 = vsub.s32 32, %v1442
        %v1444 = vshrl.u32 683565275, %v1443
        %v1445 = vshll.u32 683565275, %v1442
        %v1446 = vshrl.u32 2475754826, %v1443
        %v1447 = vor.u32 %v1445, %v1446
        %v1448 = vshll.u32 2475754826, %v1442
        %v1449 = vshrl.u32 2131351028, %v1443
        %v1450 = vor.u32 %v1448, %v1449
        %v1451 = vshll.u32 2131351028, %v1442
        %v1452 = vshrl.u32 2102212464, %v1443
        %v1453 = vor.u32 %v1451, %v1452
        %v1454 = vshll.u32 2102212464, %v1442
        %v1455 = vshrl.u32 920167782, %v1443
        %v1456 = vor.u32 %v1454, %v1455
        %v1457 = vshll.u32 920167782, %v1442
        %v1458 = vshrl.u32 1326507024, %v1443
        %v1459 = vor.u32 %v1457, %v1458
        %vm1460 = vcmp.lt.s32.totalorder %v1441, 1
        %vm1461 = vcmp.lt.s32.totalorder %v1441, 2
        %vm1462 = vcmp.lt.s32.totalorder %v1441, 3
        %vm1463 = vcmp.lt.s32.totalorder %v1441, 4
        %v1464 = vsel %vm1460, %v1444, %v1447
        %v1465 = vsel %vm1463, %v1453, 2102212464
        %v1466 = vsel %vm1462, %v1450, %v1465
        %v1467 = vsel %vm1461, %v1464, %v1466
        %v1468 = vsel %vm1460, %v1447, %v1450
        %v1469 = vsel %vm1463, %v1456, 920167782
        %v1470 = vsel %vm1462, %v1453, %v1469
        %v1471 = vsel %vm1461, %v1468, %v1470
        %v1472 = vsel %vm1460, %v1450, %v1453
        %v1473 = vsel %vm1463, %v1459, 1326507024
        %v1474 = vsel %vm1462, %v1456, %v1473
        %v1475 = vsel %vm1461, %v1472, %v1474
        %v1476 = vshll.u32 %v1436, 8
        %v1477 = vmul.u32.u64.compose %v1476, %v1475
        %v1478 = vextract.low.u32 %v1477
        %v1479 = vextract.high.u32 %v1477
        %v1480 = vmul.u32.u64.compose %v1476, %v1471
        %v1481 = vextract.low.u32 %v1480
        %v1482 = vextract.high.u32 %v1480
        %v1483 = vmul.u32 %v1476, %v1467
        %v1484 = vadd.s32 %v1479, %v1481
        %vm1485 = vc.u32 %v1479, %v1481
        %v1486 = vadd.s32 %v1482, 1
        %v1487 = vsel %vm1485, %v1486, %v1482
        %v1488 = vadd.s32 %v1483, %v1487
        %v1489 = vadd.s32 %v1488, 536870912
        %v1490 = vshrl.u32 %v1489, 30
        %v1491 = vshll.u32 %v1490, 30
        %v1492 = vsub.s32 %v1488, %v1491
        %vm1493 = vcmp.lt.s32.totalorder %v1492, 0
        %v1494 = vsub.s32 0, %v1492
        %v1495 = vsel %vm1493, %v1494, %v1492
        %v1496 = vclz %v1495
        %v1497 = vsub.s32 %v1496, 2
        %vm1498 = vcmp.gt.s32.totalorder 0, %v1497
        %v1499 = vsel %vm1498, 0, %v1497
        %v1500 = vsub.s32 32, %v1499
        %v1501 = vshll.u32 %v1492, %v1499
        %v1502 = vshrl.u32 %v1484, %v1500
        %v1503 = vor.u32 %v1501, %v1502
        %v1504 = vsub.s32 4294967266, %v1499
        %v1505 = vadd.s32 %v1504, 127
        %v1506 = vshll.u32 %v1505, 23
        %v1507 = vor.u32 4788187, %v1506
        %v1508 = vand.u32 2147483647, %v1507
        %v1510 = vcvt.s32.f32 %v1503
        %v1511 = vmul.f32 %v1510, %v1508
        %v1512 = vxor.u32 %v1511, 2147483648
        %v1513 = vsel %vm1430, %v1512, %v1511
        %v1514 = vsub.s32 4, %v1490
        %v1515 = vsel %vm1430, %v1514, %v1490
        %v1516 = vsel %vm1429, %v706, %v1513
        %v1517 = vsel %vm1429, 0, %v1515
        %v1518 = vcosq.f32.pop %v1516
        %v1519 = vsinq.f32.pop %v1516
        %vm1520 = vweird.f32 %v706
        %v1521 = vand.u32 %v1517, 3
        %vm1522 = vcmp.lt.s32.totalorder %v1521, 2
        %vm1523 = vcmp.eq.s32.totalorder %v1521, 0
        %v1524 = vxor.u32 %v1519, 2147483648
        %v1525 = vsel %vm1523, %v1518, %v1524
        %vm1526 = vcmp.eq.s32.totalorder %v1521, 2
        %v1527 = vxor.u32 %v1518, 2147483648
        %v1528 = vsel %vm1526, %v1527, %v1519
        %v1529 = vsel %vm1522, %v1525, %v1528
        %v1530 = vsel %vm1520, nan, %v1529
        %v1531 = vld [vmem:[%s4] sm:$0xff]
        %v1532 = vld [vmem:[%s4 + $0x8] sm:$0xff]
        %v1533 = vld [vmem:[%s4 + $0x10] sm:$0xff]
        %v1534 = vld [vmem:[%s4 + $0x18] sm:$0xff]
        %v1535 = vld [vmem:[%s4 + $0x20] sm:$0xff]
        %v1536 = vld [vmem:[%s4 + $0x28] sm:$0xff]
        %v1537 = vld [vmem:[%s4 + $0x30] sm:$0xff]
        %v1538 = vld [vmem:[%s4 + $0x38] sm:$0xff]
        %v1539 = vld [vmem:[%s4 + $0x40] sm:$0xff]
        %v1540 = vld [vmem:[%s4 + $0x48] sm:$0xff]
        %v1541 = vld [vmem:[%s4 + $0x50] sm:$0xff]
        %v1542 = vld [vmem:[%s4 + $0x58] sm:$0xff]
        %v1543 = vld [vmem:[%s4 + $0x60] sm:$0xff]
        %v1544 = vld [vmem:[%s4 + $0x68] sm:$0xff]
        %v1545 = vld [vmem:[%s4 + $0x70] sm:$0xff]
        %v1546 = vld [vmem:[%s4 + $0x78] sm:$0xff]
        %v1547 = vld [vmem:[%s5] sm:$0x1]
        %v1549 = vlaneseq
        %v1550 = vshrl.u32 %v1549, 7
        %v1551 = vsub.s32 0, %v1550
        %v1552 = vrot.slane %v1547, %v1551
        %1554 = vmatprep.subr.mxu0 0.0
        %1555 = vmatpush1.msra.mxu0 %v1531
        %1556 = vmatprep.subr.mxu0 0.0
        %1557 = vmatpush1.msra.mxu0 %v1532
        %1558 = vmatprep.subr.mxu0 0.0
        %1559 = vmatpush1.msra.mxu0 %v1533
        %1560 = vmatprep.subr.mxu0 0.0
        %1561 = vmatpush1.msra.mxu0 %v1534
        %1562 = vmatprep.subr.mxu0 0.0
        %1563 = vmatpush1.msra.mxu0 %v1535
        %1564 = vmatprep.subr.mxu0 0.0
        %1565 = vmatpush1.msra.mxu0 %v1536
        %1566 = vmatprep.subr.mxu0 0.0
        %1567 = vmatpush1.msra.mxu0 %v1537
        %1568 = vmatprep.subr.mxu0 0.0
        %1569 = vmatpush1.msra.mxu0 %v1538
        %1570 = vmatprep.subr.mxu0 0.0
        %1571 = vmatpush1.msra.mxu0 %v1539
        %1572 = vmatprep.subr.mxu0 0.0
        %1573 = vmatpush1.msra.mxu0 %v1540
        %1574 = vmatprep.subr.mxu0 0.0
        %1575 = vmatpush1.msra.mxu0 %v1541
        %1576 = vmatprep.subr.mxu0 0.0
        %1577 = vmatpush1.msra.mxu0 %v1542
        %1578 = vmatprep.subr.mxu0 0.0
        %1579 = vmatpush1.msra.mxu0 %v1543
        %1580 = vmatprep.subr.mxu0 0.0
        %1581 = vmatpush1.msra.mxu0 %v1544
        %1582 = vmatprep.subr.mxu0 0.0
        %1583 = vmatpush1.msra.mxu0 %v1545
        %1584 = vmatprep.subr.mxu0 0.0
        %1585 = vmatpush1.msra.mxu0 %v1546
        %1586 = vmatprep.subr.mxu0 0.0
        %1587 = vmatpush1.msra.mxu0 0.0
        %1588 = vmatprep.subr.mxu0 0.0
        %1589 = vmatpush1.msra.mxu0 0.0
        %1590 = vmatprep.subr.mxu0 0.0
        %1591 = vmatpush1.msra.mxu0 0.0
        %1592 = vmatprep.subr.mxu0 0.0
        %1593 = vmatpush1.msra.mxu0 0.0
        %1594 = vmatprep.subr.mxu0 0.0
        %1595 = vmatpush1.msra.mxu0 0.0
        %1596 = vmatprep.subr.mxu0 0.0
        %1597 = vmatpush1.msra.mxu0 0.0
        %1598 = vmatprep.subr.mxu0 0.0
        %1599 = vmatpush1.msra.mxu0 0.0
        %1600 = vmatprep.subr.mxu0 0.0
        %1601 = vmatpush1.msra.mxu0 0.0
        %1602 = vmatprep.subr.mxu0 0.0
        %1603 = vmatpush1.msra.mxu0 0.0
        %1604 = vmatprep.subr.mxu0 0.0
        %1605 = vmatpush1.msra.mxu0 0.0
        %1606 = vmatprep.subr.mxu0 0.0
        %1607 = vmatpush1.msra.mxu0 0.0
        %1608 = vmatprep.subr.mxu0 0.0
        %1609 = vmatpush1.msra.mxu0 0.0
        %1610 = vmatprep.subr.mxu0 0.0
        %1611 = vmatpush1.msra.mxu0 0.0
        %1612 = vmatprep.subr.mxu0 0.0
        %1613 = vmatpush1.msra.mxu0 0.0
        %1614 = vmatprep.subr.mxu0 0.0
        %1615 = vmatpush1.msra.mxu0 0.0
        %1616 = vmatprep.subr.mxu0 0.0
        %1617 = vmatpush1.msra.mxu0 0.0
        %1618 = vmatprep.mubr.f32.mxu0 0.0
        %1619 = vmatmul.mubr.f32.gmra.mrb[0].mxu0 %v809
        %v1620 = vpop.f32.mrb[0].mxu0
        %v1621 = vadd.f32 %v1552, %v1620
        %v1622 = vpop.f32.mrb[0].mxu0
        %1623 = vmatprep.mubr.f32.mxu0 0.0
        %1624 = vmatmul.mubr.f32.gmra.mrb[0].mxu0 %v912
        %v1625 = vpop.f32.mrb[0].mxu0
        %v1626 = vadd.f32 %v1552, %v1625
        %v1627 = vpop.f32.mrb[0].mxu0
        %1628 = vmatprep.mubr.f32.mxu0 0.0
        %1629 = vmatmul.mubr.f32.gmra.mrb[0].mxu0 %v1015
        %v1630 = vpop.f32.mrb[0].mxu0
        %v1631 = vadd.f32 %v1552, %v1630
        %v1632 = vpop.f32.mrb[0].mxu0
        %1633 = vmatprep.mubr.f32.mxu0 0.0
        %1634 = vmatmul.mubr.f32.gmra.mrb[0].mxu0 %v1118
        %v1635 = vpop.f32.mrb[0].mxu0
        %v1636 = vadd.f32 %v1552, %v1635
        %v1637 = vpop.f32.mrb[0].mxu0
        %1638 = vmatprep.mubr.f32.mxu0 0.0
        %1639 = vmatmul.mubr.f32.gmra.mrb[0].mxu0 %v1221
        %v1640 = vpop.f32.mrb[0].mxu0
        %v1641 = vadd.f32 %v1552, %v1640
        %v1642 = vpop.f32.mrb[0].mxu0
        %1643 = vmatprep.mubr.f32.mxu0 0.0
        %1644 = vmatmul.mubr.f32.gmra.mrb[0].mxu0 %v1324
        %v1645 = vpop.f32.mrb[0].mxu0
        %v1646 = vadd.f32 %v1552, %v1645
        %v1647 = vpop.f32.mrb[0].mxu0
        %1648 = vmatprep.mubr.f32.mxu0 0.0
        %1649 = vmatmul.mubr.f32.gmra.mrb[0].mxu0 %v1427
        %v1650 = vpop.f32.mrb[0].mxu0
        %v1651 = vadd.f32 %v1552, %v1650
        %v1652 = vpop.f32.mrb[0].mxu0
        %1653 = vmatprep.mubr.f32.mxu0 0.0
        %1654 = vmatmul.mubr.f32.gmra.mrb[0].mxu0 %v1530
        %v1655 = vpop.f32.mrb[0].mxu0
        %v1656 = vadd.f32 %v1552, %v1655
        %v1657 = vpop.f32.mrb[0].mxu0
        %1658 = vdwg.mxu0
        %v1659 = vxor.u32 %v1621, 2147483648
        %v1660 = vxor.u32 %v1626, 2147483648
        %v1661 = vxor.u32 %v1631, 2147483648
        %v1662 = vxor.u32 %v1636, 2147483648
        %v1663 = vxor.u32 %v1641, 2147483648
        %v1664 = vxor.u32 %v1646, 2147483648
        %v1665 = vxor.u32 %v1651, 2147483648
        %v1666 = vxor.u32 %v1656, 2147483648
        %v1667 = vmul.f32 %v1659, 1.442695
        %v1668 = vpow.pop %v1667
        %v1669 = vmul.f32 %v1660, 1.442695
        %v1670 = vpow.pop %v1669
        %v1671 = vmul.f32 %v1661, 1.442695
        %v1672 = vpow.pop %v1671
        %v1673 = vmul.f32 %v1662, 1.442695
        %v1674 = vpow.pop %v1673
        %v1675 = vmul.f32 %v1663, 1.442695
        %v1676 = vpow.pop %v1675
        %v1677 = vmul.f32 %v1664, 1.442695
        %v1678 = vpow.pop %v1677
        %v1679 = vmul.f32 %v1665, 1.442695
        %v1680 = vpow.pop %v1679
        %v1681 = vmul.f32 %v1666, 1.442695
        %v1682 = vpow.pop %v1681
        %v1683 = vadd.f32 %v1668, 1.0
        %v1684 = vadd.f32 %v1670, 1.0
        %v1685 = vadd.f32 %v1672, 1.0
        %v1686 = vadd.f32 %v1674, 1.0
        %v1687 = vadd.f32 %v1676, 1.0
        %v1688 = vadd.f32 %v1678, 1.0
        %v1689 = vadd.f32 %v1680, 1.0
        %v1690 = vadd.f32 %v1682, 1.0
        %v1691 = vrcp.pop %v1683
        %v1692 = vmul.f32 1.0, %v1691
        %v1693 = vrcp.pop %v1684
        %v1694 = vmul.f32 1.0, %v1693
        %v1695 = vrcp.pop %v1685
        %v1696 = vmul.f32 1.0, %v1695
        %v1697 = vrcp.pop %v1686
        %v1698 = vmul.f32 1.0, %v1697
        %v1699 = vrcp.pop %v1687
        %v1700 = vmul.f32 1.0, %v1699
        %v1701 = vrcp.pop %v1688
        %v1702 = vmul.f32 1.0, %v1701
        %v1703 = vrcp.pop %v1689
        %v1704 = vmul.f32 1.0, %v1703
        %v1705 = vrcp.pop %v1690
        %v1706 = vmul.f32 1.0, %v1705
        %v1707 = vmul.f32 %v1621, %v1692
        %v1708 = vmul.f32 %v1626, %v1694
        %v1709 = vmul.f32 %v1631, %v1696
        %v1710 = vmul.f32 %v1636, %v1698
        %v1711 = vmul.f32 %v1641, %v1700
        %v1712 = vmul.f32 %v1646, %v1702
        %v1713 = vmul.f32 %v1651, %v1704
        %v1714 = vmul.f32 %v1656, %v1706
        %v1715 = vld [vmem:[%s6] sm:$0xff]
        %v1716 = vld [vmem:[%s6 + $0x8] sm:$0xff]
        %v1717 = vld [vmem:[%s6 + $0x10] sm:$0xff]
        %v1718 = vld [vmem:[%s6 + $0x18] sm:$0xff]
        %v1719 = vld [vmem:[%s6 + $0x20] sm:$0xff]
        %v1720 = vld [vmem:[%s6 + $0x28] sm:$0xff]
        %v1721 = vld [vmem:[%s6 + $0x30] sm:$0xff]
        %v1722 = vld [vmem:[%s6 + $0x38] sm:$0xff]
        %v1723 = vld [vmem:[%s6 + $0x40] sm:$0xff]
        %v1724 = vld [vmem:[%s6 + $0x48] sm:$0xff]
        %v1725 = vld [vmem:[%s6 + $0x50] sm:$0xff]
        %v1726 = vld [vmem:[%s6 + $0x58] sm:$0xff]
        %v1727 = vld [vmem:[%s6 + $0x60] sm:$0xff]
        %v1728 = vld [vmem:[%s6 + $0x68] sm:$0xff]
        %v1729 = vld [vmem:[%s6 + $0x70] sm:$0xff]
        %v1730 = vld [vmem:[%s6 + $0x78] sm:$0xff]
        %v1731 = vld [vmem:[%s7] sm:$0x1]
        %v1733 = vlaneseq
        %v1734 = vshrl.u32 %v1733, 7
        %v1735 = vsub.s32 0, %v1734
        %v1736 = vrot.slane %v1731, %v1735
        %1738 = vmatprep.subr.mxu0 0.0
        %1739 = vmatpush1.msra.mxu0 %v1715
        %1740 = vmatprep.subr.mxu0 0.0
        %1741 = vmatpush1.msra.mxu0 %v1716
        %1742 = vmatprep.subr.mxu0 0.0
        %1743 = vmatpush1.msra.mxu0 %v1717
        %1744 = vmatprep.subr.mxu0 0.0
        %1745 = vmatpush1.msra.mxu0 %v1718
        %1746 = vmatprep.subr.mxu0 0.0
        %1747 = vmatpush1.msra.mxu0 %v1719
        %1748 = vmatprep.subr.mxu0 0.0
        %1749 = vmatpush1.msra.mxu0 %v1720
        %1750 = vmatprep.subr.mxu0 0.0
        %1751 = vmatpush1.msra.mxu0 %v1721
        %1752 = vmatprep.subr.mxu0 0.0
        %1753 = vmatpush1.msra.mxu0 %v1722
        %1754 = vmatprep.subr.mxu0 0.0
        %1755 = vmatpush1.msra.mxu0 %v1723
        %1756 = vmatprep.subr.mxu0 0.0
        %1757 = vmatpush1.msra.mxu0 %v1724
        %1758 = vmatprep.subr.mxu0 0.0
        %1759 = vmatpush1.msra.mxu0 %v1725
        %1760 = vmatprep.subr.mxu0 0.0
        %1761 = vmatpush1.msra.mxu0 %v1726
        %1762 = vmatprep.subr.mxu0 0.0
        %1763 = vmatpush1.msra.mxu0 %v1727
        %1764 = vmatprep.subr.mxu0 0.0
        %1765 = vmatpush1.msra.mxu0 %v1728
        %1766 = vmatprep.subr.mxu0 0.0
        %1767 = vmatpush1.msra.mxu0 %v1729
        %1768 = vmatprep.subr.mxu0 0.0
        %1769 = vmatpush1.msra.mxu0 %v1730
        %1770 = vmatprep.subr.mxu0 0.0
        %1771 = vmatpush1.msra.mxu0 0.0
        %1772 = vmatprep.subr.mxu0 0.0
        %1773 = vmatpush1.msra.mxu0 0.0
        %1774 = vmatprep.subr.mxu0 0.0
        %1775 = vmatpush1.msra.mxu0 0.0
        %1776 = vmatprep.subr.mxu0 0.0
        %1777 = vmatpush1.msra.mxu0 0.0
        %1778 = vmatprep.subr.mxu0 0.0
        %1779 = vmatpush1.msra.mxu0 0.0
        %1780 = vmatprep.subr.mxu0 0.0
        %1781 = vmatpush1.msra.mxu0 0.0
        %1782 = vmatprep.subr.mxu0 0.0
        %1783 = vmatpush1.msra.mxu0 0.0
        %1784 = vmatprep.subr.mxu0 0.0
        %1785 = vmatpush1.msra.mxu0 0.0
        %1786 = vmatprep.subr.mxu0 0.0
        %1787 = vmatpush1.msra.mxu0 0.0
        %1788 = vmatprep.subr.mxu0 0.0
        %1789 = vmatpush1.msra.mxu0 0.0
        %1790 = vmatprep.subr.mxu0 0.0
        %1791 = vmatpush1.msra.mxu0 0.0
        %1792 = vmatprep.subr.mxu0 0.0
        %1793 = vmatpush1.msra.mxu0 0.0
        %1794 = vmatprep.subr.mxu0 0.0
        %1795 = vmatpush1.msra.mxu0 0.0
        %1796 = vmatprep.subr.mxu0 0.0
        %1797 = vmatpush1.msra.mxu0 0.0
        %1798 = vmatprep.subr.mxu0 0.0
        %1799 = vmatpush1.msra.mxu0 0.0
        %1800 = vmatprep.subr.mxu0 0.0
        %1801 = vmatpush1.msra.mxu0 0.0
        %1802 = vmatprep.mubr.f32.mxu0 0.0
        %1803 = vmatmul.mubr.f32.gmra.mrb[0].mxu0 %v1707
        %v1804 = vpop.f32.mrb[0].mxu0
        %v1805 = vadd.f32 %v1736, %v1804
        %v1806 = vpop.f32.mrb[0].mxu0
        %1807 = vmatprep.mubr.f32.mxu0 0.0
        %1808 = vmatmul.mubr.f32.gmra.mrb[0].mxu0 %v1708
        %v1809 = vpop.f32.mrb[0].mxu0
        %v1810 = vadd.f32 %v1736, %v1809
        %v1811 = vpop.f32.mrb[0].mxu0
        %1812 = vmatprep.mubr.f32.mxu0 0.0
        %1813 = vmatmul.mubr.f32.gmra.mrb[0].mxu0 %v1709
        %v1814 = vpop.f32.mrb[0].mxu0
        %v1815 = vadd.f32 %v1736, %v1814
        %v1816 = vpop.f32.mrb[0].mxu0
        %1817 = vmatprep.mubr.f32.mxu0 0.0
        %1818 = vmatmul.mubr.f32.gmra.mrb[0].mxu0 %v1710
        %v1819 = vpop.f32.mrb[0].mxu0
        %v1820 = vadd.f32 %v1736, %v1819
        %v1821 = vpop.f32.mrb[0].mxu0
        %1822 = vmatprep.mubr.f32.mxu0 0.0
        %1823 = vmatmul.mubr.f32.gmra.mrb[0].mxu0 %v1711
        %v1824 = vpop.f32.mrb[0].mxu0
        %v1825 = vadd.f32 %v1736, %v1824
        %v1826 = vpop.f32.mrb[0].mxu0
        %1827 = vmatprep.mubr.f32.mxu0 0.0
        %1828 = vmatmul.mubr.f32.gmra.mrb[0].mxu0 %v1712
        %v1829 = vpop.f32.mrb[0].mxu0
        %v1830 = vadd.f32 %v1736, %v1829
        %v1831 = vpop.f32.mrb[0].mxu0
        %1832 = vmatprep.mubr.f32.mxu0 0.0
        %1833 = vmatmul.mubr.f32.gmra.mrb[0].mxu0 %v1713
        %v1834 = vpop.f32.mrb[0].mxu0
        %v1835 = vadd.f32 %v1736, %v1834
        %v1836 = vpop.f32.mrb[0].mxu0
        %1837 = vmatprep.mubr.f32.mxu0 0.0
        %1838 = vmatmul.mubr.f32.gmra.mrb[0].mxu0 %v1714
        %v1839 = vpop.f32.mrb[0].mxu0
        %v1840 = vadd.f32 %v1736, %v1839
        %v1841 = vpop.f32.mrb[0].mxu0
        %1842 = vdwg.mxu0
        %v1843 = vld [vmem:[%s626] sm:$0xff]
        %v1844 = vld [vmem:[%s626 + $0x8] sm:$0xff]
        %v1845 = vld [vmem:[%s626 + $0x10] sm:$0xff]
        %v1846 = vld [vmem:[%s626 + $0x18] sm:$0xff]
        %v1847 = vld [vmem:[%s626 + $0x20] sm:$0xff]
        %v1848 = vld [vmem:[%s626 + $0x28] sm:$0xff]
        %v1849 = vld [vmem:[%s626 + $0x30] sm:$0xff]
        %v1850 = vld [vmem:[%s626 + $0x38] sm:$0xff]
        %v1851 = vld [vmem:[%s8] sm:$0x3]
        %1853 = vset.pattern.permute.xlu0 0
        %1854 = vperm.xlu0 %1853, %v1843
        %v1855 = vpop.permute.xlu0 %1854
        %1858 = vset.pattern.permute.xlu0 0
        %1859 = vperm.xlu0 %1858, %v1844
        %v1860 = vpop.permute.xlu0 %1859
        %1863 = vset.pattern.permute.xlu0 0
        %1864 = vperm.xlu0 %1863, %v1845
        %v1865 = vpop.permute.xlu0 %1864
        %1868 = vset.pattern.permute.xlu0 0
        %1869 = vperm.xlu0 %1868, %v1846
        %v1870 = vpop.permute.xlu0 %1869
        %1873 = vset.pattern.permute.xlu0 0
        %1874 = vperm.xlu0 %1873, %v1847
        %v1875 = vpop.permute.xlu0 %1874
        %1878 = vset.pattern.permute.xlu0 0
        %1879 = vperm.xlu0 %1878, %v1848
        %v1880 = vpop.permute.xlu0 %1879
        %1883 = vset.pattern.permute.xlu0 0
        %1884 = vperm.xlu0 %1883, %v1849
        %v1885 = vpop.permute.xlu0 %1884
        %1888 = vset.pattern.permute.xlu0 0
        %1889 = vperm.xlu0 %1888, %v1850
        %v1890 = vpop.permute.xlu0 %1889
        %v1892 = vlaneseq
        %v1893 = vshrl.u32 %v1892, 7
        %v1894 = vsub.s32 0, %v1893
        %v1895 = vrot.slane %v1851, %v1894
        %v1896 = vmul.f32 %v1855, %v1895
        %v1897 = vmul.f32 %v1860, %v1895
        %v1898 = vmul.f32 %v1865, %v1895
        %v1899 = vmul.f32 %v1870, %v1895
        %v1900 = vmul.f32 %v1875, %v1895
        %v1901 = vmul.f32 %v1880, %v1895
        %v1902 = vmul.f32 %v1885, %v1895
        %v1903 = vmul.f32 %v1890, %v1895
        %1904 = vset.pattern.permute.xlu0 1
        %1905 = vperm.xlu0 %1904, %v1843
        %v1906 = vpop.permute.xlu0 %1905
        %1908 = vset.pattern.permute.xlu0 1
        %1909 = vperm.xlu0 %1908, %v1844
        %v1910 = vpop.permute.xlu0 %1909
        %1912 = vset.pattern.permute.xlu0 1
        %1913 = vperm.xlu0 %1912, %v1845
        %v1914 = vpop.permute.xlu0 %1913
        %1916 = vset.pattern.permute.xlu0 1
        %1917 = vperm.xlu0 %1916, %v1846
        %v1918 = vpop.permute.xlu0 %1917
        %1920 = vset.pattern.permute.xlu0 1
        %1921 = vperm.xlu0 %1920, %v1847
        %v1922 = vpop.permute.xlu0 %1921
        %1924 = vset.pattern.permute.xlu0 1
        %1925 = vperm.xlu0 %1924, %v1848
        %v1926 = vpop.permute.xlu0 %1925
        %1928 = vset.pattern.permute.xlu0 1
        %1929 = vperm.xlu0 %1928, %v1849
        %v1930 = vpop.permute.xlu0 %1929
        %1932 = vset.pattern.permute.xlu0 1
        %1933 = vperm.xlu0 %1932, %v1850
        %v1934 = vpop.permute.xlu0 %1933
        %v1936 = vlaneseq
        %v1937 = vshrl.u32 %v1936, 7
        %v1938 = vsub.s32 1, %v1937
        %v1939 = vrot.slane %v1851, %v1938
        %v1940 = vmul.f32 %v1906, %v1939
        %v1941 = vmul.f32 %v1910, %v1939
        %v1942 = vmul.f32 %v1914, %v1939
        %v1943 = vmul.f32 %v1918, %v1939
        %v1944 = vmul.f32 %v1922, %v1939
        %v1945 = vmul.f32 %v1926, %v1939
        %v1946 = vmul.f32 %v1930, %v1939
        %v1947 = vmul.f32 %v1934, %v1939
        %v1948 = vadd.f32 %v1896, %v1940
        %v1949 = vadd.f32 %v1897, %v1941
        %v1950 = vadd.f32 %v1898, %v1942
        %v1951 = vadd.f32 %v1899, %v1943
        %v1952 = vadd.f32 %v1900, %v1944
        %v1953 = vadd.f32 %v1901, %v1945
        %v1954 = vadd.f32 %v1902, %v1946
        %v1955 = vadd.f32 %v1903, %v1947
        %v1956 = vld [vmem:[%s9] sm:$0x1]
        %v1958 = vlaneseq
        %v1959 = vshrl.u32 %v1958, 7
        %v1960 = vsub.s32 0, %v1959
        %v1961 = vrot.slane %v1956, %v1960
        %v1963 = vadd.f32 %v1948, %v1961
        %v1964 = vadd.f32 %v1949, %v1961
        %v1965 = vadd.f32 %v1950, %v1961
        %v1966 = vadd.f32 %v1951, %v1961
        %v1967 = vadd.f32 %v1952, %v1961
        %v1968 = vadd.f32 %v1953, %v1961
        %v1969 = vadd.f32 %v1954, %v1961
        %v1970 = vadd.f32 %v1955, %v1961
        %v1971 = vxor.u32 %v1963, 2147483648
        %v1972 = vxor.u32 %v1964, 2147483648
        %v1973 = vxor.u32 %v1965, 2147483648
        %v1974 = vxor.u32 %v1966, 2147483648
        %v1975 = vxor.u32 %v1967, 2147483648
        %v1976 = vxor.u32 %v1968, 2147483648
        %v1977 = vxor.u32 %v1969, 2147483648
        %v1978 = vxor.u32 %v1970, 2147483648
        %v1979 = vmul.f32 %v1971, 1.442695
        %v1980 = vpow.pop %v1979
        %v1981 = vmul.f32 %v1972, 1.442695
        %v1982 = vpow.pop %v1981
        %v1983 = vmul.f32 %v1973, 1.442695
        %v1984 = vpow.pop %v1983
        %v1985 = vmul.f32 %v1974, 1.442695
        %v1986 = vpow.pop %v1985
        %v1987 = vmul.f32 %v1975, 1.442695
        %v1988 = vpow.pop %v1987
        %v1989 = vmul.f32 %v1976, 1.442695
        %v1990 = vpow.pop %v1989
        %v1991 = vmul.f32 %v1977, 1.442695
        %v1992 = vpow.pop %v1991
        %v1993 = vmul.f32 %v1978, 1.442695
        %v1994 = vpow.pop %v1993
        %v1995 = vadd.f32 %v1980, 1.0
        %v1996 = vadd.f32 %v1982, 1.0
        %v1997 = vadd.f32 %v1984, 1.0
        %v1998 = vadd.f32 %v1986, 1.0
        %v1999 = vadd.f32 %v1988, 1.0
        %v2000 = vadd.f32 %v1990, 1.0
        %v2001 = vadd.f32 %v1992, 1.0
        %v2002 = vadd.f32 %v1994, 1.0
        %v2003 = vrcp.pop %v1995
        %v2004 = vmul.f32 1.0, %v2003
        %v2005 = vrcp.pop %v1996
        %v2006 = vmul.f32 1.0, %v2005
        %v2007 = vrcp.pop %v1997
        %v2008 = vmul.f32 1.0, %v2007
        %v2009 = vrcp.pop %v1998
        %v2010 = vmul.f32 1.0, %v2009
        %v2011 = vrcp.pop %v1999
        %v2012 = vmul.f32 1.0, %v2011
        %v2013 = vrcp.pop %v2000
        %v2014 = vmul.f32 1.0, %v2013
        %v2015 = vrcp.pop %v2001
        %v2016 = vmul.f32 1.0, %v2015
        %v2017 = vrcp.pop %v2002
        %v2018 = vmul.f32 1.0, %v2017
        %v2019 = vmul.f32 %v1963, %v2004
        %v2020 = vmul.f32 %v1964, %v2006
        %v2021 = vmul.f32 %v1965, %v2008
        %v2022 = vmul.f32 %v1966, %v2010
        %v2023 = vmul.f32 %v1967, %v2012
        %v2024 = vmul.f32 %v1968, %v2014
        %v2025 = vmul.f32 %v1969, %v2016
        %v2026 = vmul.f32 %v1970, %v2018
        %v2027 = vld [vmem:[%s10] sm:$0xff]
        %v2028 = vld [vmem:[%s10 + $0x8] sm:$0xff]
        %v2029 = vld [vmem:[%s10 + $0x10] sm:$0xff]
        %v2030 = vld [vmem:[%s10 + $0x18] sm:$0xff]
        %v2031 = vld [vmem:[%s10 + $0x20] sm:$0xff]
        %v2032 = vld [vmem:[%s10 + $0x28] sm:$0xff]
        %v2033 = vld [vmem:[%s10 + $0x30] sm:$0xff]
        %v2034 = vld [vmem:[%s10 + $0x38] sm:$0xff]
        %v2035 = vld [vmem:[%s10 + $0x40] sm:$0xff]
        %v2036 = vld [vmem:[%s10 + $0x48] sm:$0xff]
        %v2037 = vld [vmem:[%s10 + $0x50] sm:$0xff]
        %v2038 = vld [vmem:[%s10 + $0x58] sm:$0xff]
        %v2039 = vld [vmem:[%s10 + $0x60] sm:$0xff]
        %v2040 = vld [vmem:[%s10 + $0x68] sm:$0xff]
        %v2041 = vld [vmem:[%s10 + $0x70] sm:$0xff]
        %v2042 = vld [vmem:[%s10 + $0x78] sm:$0xff]
        %v2043 = vld [vmem:[%s11] sm:$0x1]
        %v2045 = vlaneseq
        %v2046 = vshrl.u32 %v2045, 7
        %v2047 = vsub.s32 0, %v2046
        %v2048 = vrot.slane %v2043, %v2047
        %2050 = vmatprep.subr.mxu0 0.0
        %2051 = vmatpush1.msra.mxu0 %v2027
        %2052 = vmatprep.subr.mxu0 0.0
        %2053 = vmatpush1.msra.mxu0 %v2028
        %2054 = vmatprep.subr.mxu0 0.0
        %2055 = vmatpush1.msra.mxu0 %v2029
        %2056 = vmatprep.subr.mxu0 0.0
        %2057 = vmatpush1.msra.mxu0 %v2030
        %2058 = vmatprep.subr.mxu0 0.0
        %2059 = vmatpush1.msra.mxu0 %v2031
        %2060 = vmatprep.subr.mxu0 0.0
        %2061 = vmatpush1.msra.mxu0 %v2032
        %2062 = vmatprep.subr.mxu0 0.0
        %2063 = vmatpush1.msra.mxu0 %v2033
        %2064 = vmatprep.subr.mxu0 0.0
        %2065 = vmatpush1.msra.mxu0 %v2034
        %2066 = vmatprep.subr.mxu0 0.0
        %2067 = vmatpush1.msra.mxu0 %v2035
        %2068 = vmatprep.subr.mxu0 0.0
        %2069 = vmatpush1.msra.mxu0 %v2036
        %2070 = vmatprep.subr.mxu0 0.0
        %2071 = vmatpush1.msra.mxu0 %v2037
        %2072 = vmatprep.subr.mxu0 0.0
        %2073 = vmatpush1.msra.mxu0 %v2038
        %2074 = vmatprep.subr.mxu0 0.0
        %2075 = vmatpush1.msra.mxu0 %v2039
        %2076 = vmatprep.subr.mxu0 0.0
        %2077 = vmatpush1.msra.mxu0 %v2040
        %2078 = vmatprep.subr.mxu0 0.0
        %2079 = vmatpush1.msra.mxu0 %v2041
        %2080 = vmatprep.subr.mxu0 0.0
        %2081 = vmatpush1.msra.mxu0 %v2042
        %2082 = vmatprep.subr.mxu0 0.0
        %2083 = vmatpush1.msra.mxu0 0.0
        %2084 = vmatprep.subr.mxu0 0.0
        %2085 = vmatpush1.msra.mxu0 0.0
        %2086 = vmatprep.subr.mxu0 0.0
        %2087 = vmatpush1.msra.mxu0 0.0
        %2088 = vmatprep.subr.mxu0 0.0
        %2089 = vmatpush1.msra.mxu0 0.0
        %2090 = vmatprep.subr.mxu0 0.0
        %2091 = vmatpush1.msra.mxu0 0.0
        %2092 = vmatprep.subr.mxu0 0.0
        %2093 = vmatpush1.msra.mxu0 0.0
        %2094 = vmatprep.subr.mxu0 0.0
        %2095 = vmatpush1.msra.mxu0 0.0
        %2096 = vmatprep.subr.mxu0 0.0
        %2097 = vmatpush1.msra.mxu0 0.0
        %2098 = vmatprep.subr.mxu0 0.0
        %2099 = vmatpush1.msra.mxu0 0.0
        %2100 = vmatprep.subr.mxu0 0.0
        %2101 = vmatpush1.msra.mxu0 0.0
        %2102 = vmatprep.subr.mxu0 0.0
        %2103 = vmatpush1.msra.mxu0 0.0
        %2104 = vmatprep.subr.mxu0 0.0
        %2105 = vmatpush1.msra.mxu0 0.0
        %2106 = vmatprep.subr.mxu0 0.0
        %2107 = vmatpush1.msra.mxu0 0.0
        %2108 = vmatprep.subr.mxu0 0.0
        %2109 = vmatpush1.msra.mxu0 0.0
        %2110 = vmatprep.subr.mxu0 0.0
        %2111 = vmatpush1.msra.mxu0 0.0
        %2112 = vmatprep.subr.mxu0 0.0
        %2113 = vmatpush1.msra.mxu0 0.0
        %2114 = vmatprep.mubr.f32.mxu0 0.0
        %2115 = vmatmul.mubr.f32.gmra.mrb[0].mxu0 %v2019
        %v2116 = vpop.f32.mrb[0].mxu0
        %v2117 = vadd.f32 %v2048, %v2116
        %v2118 = vpop.f32.mrb[0].mxu0
        %2119 = vmatprep.mubr.f32.mxu0 0.0
        %2120 = vmatmul.mubr.f32.gmra.mrb[0].mxu0 %v2020
        %v2121 = vpop.f32.mrb[0].mxu0
        %v2122 = vadd.f32 %v2048, %v2121
        %v2123 = vpop.f32.mrb[0].mxu0
        %2124 = vmatprep.mubr.f32.mxu0 0.0
        %2125 = vmatmul.mubr.f32.gmra.mrb[0].mxu0 %v2021
        %v2126 = vpop.f32.mrb[0].mxu0
        %v2127 = vadd.f32 %v2048, %v2126
        %v2128 = vpop.f32.mrb[0].mxu0
        %2129 = vmatprep.mubr.f32.mxu0 0.0
        %2130 = vmatmul.mubr.f32.gmra.mrb[0].mxu0 %v2022
        %v2131 = vpop.f32.mrb[0].mxu0
        %v2132 = vadd.f32 %v2048, %v2131
        %v2133 = vpop.f32.mrb[0].mxu0
        %2134 = vmatprep.mubr.f32.mxu0 0.0
        %2135 = vmatmul.mubr.f32.gmra.mrb[0].mxu0 %v2023
        %v2136 = vpop.f32.mrb[0].mxu0
        %v2137 = vadd.f32 %v2048, %v2136
        %v2138 = vpop.f32.mrb[0].mxu0
        %2139 = vmatprep.mubr.f32.mxu0 0.0
        %2140 = vmatmul.mubr.f32.gmra.mrb[0].mxu0 %v2024
        %v2141 = vpop.f32.mrb[0].mxu0
        %v2142 = vadd.f32 %v2048, %v2141
        %v2143 = vpop.f32.mrb[0].mxu0
        %2144 = vmatprep.mubr.f32.mxu0 0.0
        %2145 = vmatmul.mubr.f32.gmra.mrb[0].mxu0 %v2025
        %v2146 = vpop.f32.mrb[0].mxu0
        %v2147 = vadd.f32 %v2048, %v2146
        %v2148 = vpop.f32.mrb[0].mxu0
        %2149 = vmatprep.mubr.f32.mxu0 0.0
        %2150 = vmatmul.mubr.f32.gmra.mrb[0].mxu0 %v2026
        %v2151 = vpop.f32.mrb[0].mxu0
        %v2152 = vadd.f32 %v2048, %v2151
        %v2153 = vpop.f32.mrb[0].mxu0
        %2154 = vdwg.mxu0
        %v2155 = vxor.u32 %v2117, 2147483648
        %v2156 = vxor.u32 %v2122, 2147483648
        %v2157 = vxor.u32 %v2127, 2147483648
        %v2158 = vxor.u32 %v2132, 2147483648
        %v2159 = vxor.u32 %v2137, 2147483648
        %v2160 = vxor.u32 %v2142, 2147483648
        %v2161 = vxor.u32 %v2147, 2147483648
        %v2162 = vxor.u32 %v2152, 2147483648
        %v2163 = vmul.f32 %v2155, 1.442695
        %v2164 = vpow.pop %v2163
        %v2165 = vmul.f32 %v2156, 1.442695
        %v2166 = vpow.pop %v2165
        %v2167 = vmul.f32 %v2157, 1.442695
        %v2168 = vpow.pop %v2167
        %v2169 = vmul.f32 %v2158, 1.442695
        %v2170 = vpow.pop %v2169
        %v2171 = vmul.f32 %v2159, 1.442695
        %v2172 = vpow.pop %v2171
        %v2173 = vmul.f32 %v2160, 1.442695
        %v2174 = vpow.pop %v2173
        %v2175 = vmul.f32 %v2161, 1.442695
        %v2176 = vpow.pop %v2175
        %v2177 = vmul.f32 %v2162, 1.442695
        %v2178 = vpow.pop %v2177
        %v2179 = vadd.f32 %v2164, 1.0
        %v2180 = vadd.f32 %v2166, 1.0
        %v2181 = vadd.f32 %v2168, 1.0
        %v2182 = vadd.f32 %v2170, 1.0
        %v2183 = vadd.f32 %v2172, 1.0
        %v2184 = vadd.f32 %v2174, 1.0
        %v2185 = vadd.f32 %v2176, 1.0
        %v2186 = vadd.f32 %v2178, 1.0
        %v2187 = vrcp.pop %v2179
        %v2188 = vmul.f32 1.0, %v2187
        %v2189 = vrcp.pop %v2180
        %v2190 = vmul.f32 1.0, %v2189
        %v2191 = vrcp.pop %v2181
        %v2192 = vmul.f32 1.0, %v2191
        %v2193 = vrcp.pop %v2182
        %v2194 = vmul.f32 1.0, %v2193
        %v2195 = vrcp.pop %v2183
        %v2196 = vmul.f32 1.0, %v2195
        %v2197 = vrcp.pop %v2184
        %v2198 = vmul.f32 1.0, %v2197
        %v2199 = vrcp.pop %v2185
        %v2200 = vmul.f32 1.0, %v2199
        %v2201 = vrcp.pop %v2186
        %v2202 = vmul.f32 1.0, %v2201
        %v2203 = vmul.f32 %v2117, %v2188
        %v2204 = vmul.f32 %v2122, %v2190
        %v2205 = vmul.f32 %v2127, %v2192
        %v2206 = vmul.f32 %v2132, %v2194
        %v2207 = vmul.f32 %v2137, %v2196
        %v2208 = vmul.f32 %v2142, %v2198
        %v2209 = vmul.f32 %v2147, %v2200
        %v2210 = vmul.f32 %v2152, %v2202
        %v2211 = vld [vmem:[%s12] sm:$0xff]
        %v2212 = vld [vmem:[%s12 + $0x8] sm:$0xff]
        %v2213 = vld [vmem:[%s12 + $0x10] sm:$0xff]
        %v2214 = vld [vmem:[%s12 + $0x18] sm:$0xff]
        %v2215 = vld [vmem:[%s12 + $0x20] sm:$0xff]
        %v2216 = vld [vmem:[%s12 + $0x28] sm:$0xff]
        %v2217 = vld [vmem:[%s12 + $0x30] sm:$0xff]
        %v2218 = vld [vmem:[%s12 + $0x38] sm:$0xff]
        %v2219 = vld [vmem:[%s12 + $0x40] sm:$0xff]
        %v2220 = vld [vmem:[%s12 + $0x48] sm:$0xff]
        %v2221 = vld [vmem:[%s12 + $0x50] sm:$0xff]
        %v2222 = vld [vmem:[%s12 + $0x58] sm:$0xff]
        %v2223 = vld [vmem:[%s12 + $0x60] sm:$0xff]
        %v2224 = vld [vmem:[%s12 + $0x68] sm:$0xff]
        %v2225 = vld [vmem:[%s12 + $0x70] sm:$0xff]
        %v2226 = vld [vmem:[%s12 + $0x78] sm:$0xff]
        %v2227 = vld [vmem:[%s13] sm:$0x1]
        %v2229 = vlaneseq
        %v2230 = vshrl.u32 %v2229, 7
        %v2231 = vsub.s32 0, %v2230
        %v2232 = vrot.slane %v2227, %v2231
        %2234 = vmatprep.subr.mxu0 0.0
        %2235 = vmatpush1.msra.mxu0 %v2211
        %2236 = vmatprep.subr.mxu0 0.0
        %2237 = vmatpush1.msra.mxu0 %v2212
        %2238 = vmatprep.subr.mxu0 0.0
        %2239 = vmatpush1.msra.mxu0 %v2213
        %2240 = vmatprep.subr.mxu0 0.0
        %2241 = vmatpush1.msra.mxu0 %v2214
        %2242 = vmatprep.subr.mxu0 0.0
        %2243 = vmatpush1.msra.mxu0 %v2215
        %2244 = vmatprep.subr.mxu0 0.0
        %2245 = vmatpush1.msra.mxu0 %v2216
        %2246 = vmatprep.subr.mxu0 0.0
        %2247 = vmatpush1.msra.mxu0 %v2217
        %2248 = vmatprep.subr.mxu0 0.0
        %2249 = vmatpush1.msra.mxu0 %v2218
        %2250 = vmatprep.subr.mxu0 0.0
        %2251 = vmatpush1.msra.mxu0 %v2219
        %2252 = vmatprep.subr.mxu0 0.0
        %2253 = vmatpush1.msra.mxu0 %v2220
        %2254 = vmatprep.subr.mxu0 0.0
        %2255 = vmatpush1.msra.mxu0 %v2221
        %2256 = vmatprep.subr.mxu0 0.0
        %2257 = vmatpush1.msra.mxu0 %v2222
        %2258 = vmatprep.subr.mxu0 0.0
        %2259 = vmatpush1.msra.mxu0 %v2223
        %2260 = vmatprep.subr.mxu0 0.0
        %2261 = vmatpush1.msra.mxu0 %v2224
        %2262 = vmatprep.subr.mxu0 0.0
        %2263 = vmatpush1.msra.mxu0 %v2225
        %2264 = vmatprep.subr.mxu0 0.0
        %2265 = vmatpush1.msra.mxu0 %v2226
        %2266 = vmatprep.subr.mxu0 0.0
        %2267 = vmatpush1.msra.mxu0 0.0
        %2268 = vmatprep.subr.mxu0 0.0
        %2269 = vmatpush1.msra.mxu0 0.0
        %2270 = vmatprep.subr.mxu0 0.0
        %2271 = vmatpush1.msra.mxu0 0.0
        %2272 = vmatprep.subr.mxu0 0.0
        %2273 = vmatpush1.msra.mxu0 0.0
        %2274 = vmatprep.subr.mxu0 0.0
        %2275 = vmatpush1.msra.mxu0 0.0
        %2276 = vmatprep.subr.mxu0 0.0
        %2277 = vmatpush1.msra.mxu0 0.0
        %2278 = vmatprep.subr.mxu0 0.0
        %2279 = vmatpush1.msra.mxu0 0.0
        %2280 = vmatprep.subr.mxu0 0.0
        %2281 = vmatpush1.msra.mxu0 0.0
        %2282 = vmatprep.subr.mxu0 0.0
        %2283 = vmatpush1.msra.mxu0 0.0
        %2284 = vmatprep.subr.mxu0 0.0
        %2285 = vmatpush1.msra.mxu0 0.0
        %2286 = vmatprep.subr.mxu0 0.0
        %2287 = vmatpush1.msra.mxu0 0.0
        %2288 = vmatprep.subr.mxu0 0.0
        %2289 = vmatpush1.msra.mxu0 0.0
        %2290 = vmatprep.subr.mxu0 0.0
        %2291 = vmatpush1.msra.mxu0 0.0
        %2292 = vmatprep.subr.mxu0 0.0
        %2293 = vmatpush1.msra.mxu0 0.0
        %2294 = vmatprep.subr.mxu0 0.0
        %2295 = vmatpush1.msra.mxu0 0.0
        %2296 = vmatprep.subr.mxu0 0.0
        %2297 = vmatpush1.msra.mxu0 0.0
        %2298 = vmatprep.mubr.f32.mxu0 0.0
        %2299 = vmatmul.mubr.f32.gmra.mrb[0].mxu0 %v2203
        %v2300 = vpop.f32.mrb[0].mxu0
        %v2301 = vadd.f32 %v2232, %v2300
        %v2302 = vpop.f32.mrb[0].mxu0
        %2303 = vmatprep.mubr.f32.mxu0 0.0
        %2304 = vmatmul.mubr.f32.gmra.mrb[0].mxu0 %v2204
        %v2305 = vpop.f32.mrb[0].mxu0
        %v2306 = vadd.f32 %v2232, %v2305
        %v2307 = vpop.f32.mrb[0].mxu0
        %2308 = vmatprep.mubr.f32.mxu0 0.0
        %2309 = vmatmul.mubr.f32.gmra.mrb[0].mxu0 %v2205
        %v2310 = vpop.f32.mrb[0].mxu0
        %v2311 = vadd.f32 %v2232, %v2310
        %v2312 = vpop.f32.mrb[0].mxu0
        %2313 = vmatprep.mubr.f32.mxu0 0.0
        %2314 = vmatmul.mubr.f32.gmra.mrb[0].mxu0 %v2206
        %v2315 = vpop.f32.mrb[0].mxu0
        %v2316 = vadd.f32 %v2232, %v2315
        %v2317 = vpop.f32.mrb[0].mxu0
        %2318 = vmatprep.mubr.f32.mxu0 0.0
        %2319 = vmatmul.mubr.f32.gmra.mrb[0].mxu0 %v2207
        %v2320 = vpop.f32.mrb[0].mxu0
        %v2321 = vadd.f32 %v2232, %v2320
        %v2322 = vpop.f32.mrb[0].mxu0
        %2323 = vmatprep.mubr.f32.mxu0 0.0
        %2324 = vmatmul.mubr.f32.gmra.mrb[0].mxu0 %v2208
        %v2325 = vpop.f32.mrb[0].mxu0
        %v2326 = vadd.f32 %v2232, %v2325
        %v2327 = vpop.f32.mrb[0].mxu0
        %2328 = vmatprep.mubr.f32.mxu0 0.0
        %2329 = vmatmul.mubr.f32.gmra.mrb[0].mxu0 %v2209
        %v2330 = vpop.f32.mrb[0].mxu0
        %v2331 = vadd.f32 %v2232, %v2330
        %v2332 = vpop.f32.mrb[0].mxu0
        %2333 = vmatprep.mubr.f32.mxu0 0.0
        %2334 = vmatmul.mubr.f32.gmra.mrb[0].mxu0 %v2210
        %v2335 = vpop.f32.mrb[0].mxu0
        %v2336 = vadd.f32 %v2232, %v2335
        %v2337 = vpop.f32.mrb[0].mxu0
        %2338 = vdwg.mxu0
        %v2339 = vadd.f32 %v2301, %v1805
        %v2340 = vadd.f32 %v2306, %v1810
        %v2341 = vadd.f32 %v2311, %v1815
        %v2342 = vadd.f32 %v2316, %v1820
        %v2343 = vadd.f32 %v2321, %v1825
        %v2344 = vadd.f32 %v2326, %v1830
        %v2345 = vadd.f32 %v2331, %v1835
        %v2346 = vadd.f32 %v2336, %v1840
        %v2347 = vld [vmem:[#allocation2] sm:$0xff]
        %v2348 = vld [vmem:[#allocation2 + $0x8] sm:$0xff]
        %v2349 = vld [vmem:[#allocation2 + $0x10] sm:$0xff]
        %v2350 = vld [vmem:[#allocation2 + $0x18] sm:$0xff]
        %v2351 = vld [vmem:[#allocation2 + $0x20] sm:$0xff]
        %v2352 = vld [vmem:[#allocation2 + $0x28] sm:$0xff]
        %v2353 = vld [vmem:[#allocation2 + $0x30] sm:$0xff]
        %v2354 = vld [vmem:[#allocation2 + $0x38] sm:$0xff]
        %v2355 = vld [vmem:[#allocation2 + $0x40] sm:$0xff]
        %v2356 = vld [vmem:[#allocation2 + $0x48] sm:$0xff]
        %v2357 = vld [vmem:[#allocation2 + $0x50] sm:$0xff]
        %v2358 = vld [vmem:[#allocation2 + $0x58] sm:$0xff]
        %v2359 = vld [vmem:[#allocation2 + $0x60] sm:$0xff]
        %v2360 = vld [vmem:[#allocation2 + $0x68] sm:$0xff]
        %v2361 = vld [vmem:[#allocation2 + $0x70] sm:$0xff]
        %v2362 = vld [vmem:[#allocation2 + $0x78] sm:$0xff]
        %v2363 = vld [vmem:[%s15] sm:$0x1]
        %v2365 = vlaneseq
        %v2366 = vshrl.u32 %v2365, 7
        %v2367 = vsub.s32 0, %v2366
        %v2368 = vrot.slane %v2363, %v2367
        %2370 = vmatprep.subr.mxu0 0.0
        %2371 = vmatpush1.msra.mxu0 %v2347
        %2372 = vmatprep.subr.mxu0 0.0
        %2373 = vmatpush1.msra.mxu0 %v2348
        %2374 = vmatprep.subr.mxu0 0.0
        %2375 = vmatpush1.msra.mxu0 %v2349
        %2376 = vmatprep.subr.mxu0 0.0
        %2377 = vmatpush1.msra.mxu0 %v2350
        %2378 = vmatprep.subr.mxu0 0.0
        %2379 = vmatpush1.msra.mxu0 %v2351
        %2380 = vmatprep.subr.mxu0 0.0
        %2381 = vmatpush1.msra.mxu0 %v2352
        %2382 = vmatprep.subr.mxu0 0.0
        %2383 = vmatpush1.msra.mxu0 %v2353
        %2384 = vmatprep.subr.mxu0 0.0
        %2385 = vmatpush1.msra.mxu0 %v2354
        %2386 = vmatprep.subr.mxu0 0.0
        %2387 = vmatpush1.msra.mxu0 %v2355
        %2388 = vmatprep.subr.mxu0 0.0
        %2389 = vmatpush1.msra.mxu0 %v2356
        %2390 = vmatprep.subr.mxu0 0.0
        %2391 = vmatpush1.msra.mxu0 %v2357
        %2392 = vmatprep.subr.mxu0 0.0
        %2393 = vmatpush1.msra.mxu0 %v2358
        %2394 = vmatprep.subr.mxu0 0.0
        %2395 = vmatpush1.msra.mxu0 %v2359
        %2396 = vmatprep.subr.mxu0 0.0
        %2397 = vmatpush1.msra.mxu0 %v2360
        %2398 = vmatprep.subr.mxu0 0.0
        %2399 = vmatpush1.msra.mxu0 %v2361
        %2400 = vmatprep.subr.mxu0 0.0
        %2401 = vmatpush1.msra.mxu0 %v2362
        %2402 = vmatprep.subr.mxu0 0.0
        %2403 = vmatpush1.msra.mxu0 0.0
        %2404 = vmatprep.subr.mxu0 0.0
        %2405 = vmatpush1.msra.mxu0 0.0
        %2406 = vmatprep.subr.mxu0 0.0
        %2407 = vmatpush1.msra.mxu0 0.0
        %2408 = vmatprep.subr.mxu0 0.0
        %2409 = vmatpush1.msra.mxu0 0.0
        %2410 = vmatprep.subr.mxu0 0.0
        %2411 = vmatpush1.msra.mxu0 0.0
        %2412 = vmatprep.subr.mxu0 0.0
        %2413 = vmatpush1.msra.mxu0 0.0
        %2414 = vmatprep.subr.mxu0 0.0
        %2415 = vmatpush1.msra.mxu0 0.0
        %2416 = vmatprep.subr.mxu0 0.0
        %2417 = vmatpush1.msra.mxu0 0.0
        %2418 = vmatprep.subr.mxu0 0.0
        %2419 = vmatpush1.msra.mxu0 0.0
        %2420 = vmatprep.subr.mxu0 0.0
        %2421 = vmatpush1.msra.mxu0 0.0
        %2422 = vmatprep.subr.mxu0 0.0
        %2423 = vmatpush1.msra.mxu0 0.0
        %2424 = vmatprep.subr.mxu0 0.0
        %2425 = vmatpush1.msra.mxu0 0.0
        %2426 = vmatprep.subr.mxu0 0.0
        %2427 = vmatpush1.msra.mxu0 0.0
        %2428 = vmatprep.subr.mxu0 0.0
        %2429 = vmatpush1.msra.mxu0 0.0
        %2430 = vmatprep.subr.mxu0 0.0
        %2431 = vmatpush1.msra.mxu0 0.0
        %2432 = vmatprep.subr.mxu0 0.0
        %2433 = vmatpush1.msra.mxu0 0.0
        %2434 = vmatprep.mubr.f32.mxu0 0.0
        %2435 = vmatmul.mubr.f32.gmra.mrb[0].mxu0 %v2339
        %v2436 = vpop.f32.mrb[0].mxu0
        %v2437 = vadd.f32 %v2368, %v2436
        %v2438 = vpop.f32.mrb[0].mxu0
        %2439 = vmatprep.mubr.f32.mxu0 0.0
        %2440 = vmatmul.mubr.f32.gmra.mrb[0].mxu0 %v2340
        %v2441 = vpop.f32.mrb[0].mxu0
        %v2442 = vadd.f32 %v2368, %v2441
        %v2443 = vpop.f32.mrb[0].mxu0
        %2444 = vmatprep.mubr.f32.mxu0 0.0
        %2445 = vmatmul.mubr.f32.gmra.mrb[0].mxu0 %v2341
        %v2446 = vpop.f32.mrb[0].mxu0
        %v2447 = vadd.f32 %v2368, %v2446
        %v2448 = vpop.f32.mrb[0].mxu0
        %2449 = vmatprep.mubr.f32.mxu0 0.0
        %2450 = vmatmul.mubr.f32.gmra.mrb[0].mxu0 %v2342
        %v2451 = vpop.f32.mrb[0].mxu0
        %v2452 = vadd.f32 %v2368, %v2451
        %v2453 = vpop.f32.mrb[0].mxu0
        %2454 = vmatprep.mubr.f32.mxu0 0.0
        %2455 = vmatmul.mubr.f32.gmra.mrb[0].mxu0 %v2343
        %v2456 = vpop.f32.mrb[0].mxu0
        %v2457 = vadd.f32 %v2368, %v2456
        %v2458 = vpop.f32.mrb[0].mxu0
        %2459 = vmatprep.mubr.f32.mxu0 0.0
        %2460 = vmatmul.mubr.f32.gmra.mrb[0].mxu0 %v2344
        %v2461 = vpop.f32.mrb[0].mxu0
        %v2462 = vadd.f32 %v2368, %v2461
        %v2463 = vpop.f32.mrb[0].mxu0
        %2464 = vmatprep.mubr.f32.mxu0 0.0
        %2465 = vmatmul.mubr.f32.gmra.mrb[0].mxu0 %v2345
        %v2466 = vpop.f32.mrb[0].mxu0
        %v2467 = vadd.f32 %v2368, %v2466
        %v2468 = vpop.f32.mrb[0].mxu0
        %2469 = vmatprep.mubr.f32.mxu0 0.0
        %2470 = vmatmul.mubr.f32.gmra.mrb[0].mxu0 %v2346
        %v2471 = vpop.f32.mrb[0].mxu0
        %v2472 = vadd.f32 %v2368, %v2471
        %v2473 = vpop.f32.mrb[0].mxu0
        %2474 = vdwg.mxu0
        %v2475 = vxor.u32 %v2437, 2147483648
        %v2476 = vxor.u32 %v2442, 2147483648
        %v2477 = vxor.u32 %v2447, 2147483648
        %v2478 = vxor.u32 %v2452, 2147483648
        %v2479 = vxor.u32 %v2457, 2147483648
        %v2480 = vxor.u32 %v2462, 2147483648
        %v2481 = vxor.u32 %v2467, 2147483648
        %v2482 = vxor.u32 %v2472, 2147483648
        %v2483 = vmul.f32 %v2475, 1.442695
        %v2484 = vpow.pop %v2483
        %v2485 = vmul.f32 %v2476, 1.442695
        %v2486 = vpow.pop %v2485
        %v2487 = vmul.f32 %v2477, 1.442695
        %v2488 = vpow.pop %v2487
        %v2489 = vmul.f32 %v2478, 1.442695
        %v2490 = vpow.pop %v2489
        %v2491 = vmul.f32 %v2479, 1.442695
        %v2492 = vpow.pop %v2491
        %v2493 = vmul.f32 %v2480, 1.442695
        %v2494 = vpow.pop %v2493
        %v2495 = vmul.f32 %v2481, 1.442695
        %v2496 = vpow.pop %v2495
        %v2497 = vmul.f32 %v2482, 1.442695
        %v2498 = vpow.pop %v2497
        %v2499 = vadd.f32 %v2484, 1.0
        %v2500 = vadd.f32 %v2486, 1.0
        %v2501 = vadd.f32 %v2488, 1.0
        %v2502 = vadd.f32 %v2490, 1.0
        %v2503 = vadd.f32 %v2492, 1.0
        %v2504 = vadd.f32 %v2494, 1.0
        %v2505 = vadd.f32 %v2496, 1.0
        %v2506 = vadd.f32 %v2498, 1.0
        %v2507 = vrcp.pop %v2499
        %v2508 = vmul.f32 1.0, %v2507
        %v2509 = vrcp.pop %v2500
        %v2510 = vmul.f32 1.0, %v2509
        %v2511 = vrcp.pop %v2501
        %v2512 = vmul.f32 1.0, %v2511
        %v2513 = vrcp.pop %v2502
        %v2514 = vmul.f32 1.0, %v2513
        %v2515 = vrcp.pop %v2503
        %v2516 = vmul.f32 1.0, %v2515
        %v2517 = vrcp.pop %v2504
        %v2518 = vmul.f32 1.0, %v2517
        %v2519 = vrcp.pop %v2505
        %v2520 = vmul.f32 1.0, %v2519
        %v2521 = vrcp.pop %v2506
        %v2522 = vmul.f32 1.0, %v2521
        %v2523 = vmul.f32 %v2437, %v2508
        %v2524 = vmul.f32 %v2442, %v2510
        %v2525 = vmul.f32 %v2447, %v2512
        %v2526 = vmul.f32 %v2452, %v2514
        %v2527 = vmul.f32 %v2457, %v2516
        %v2528 = vmul.f32 %v2462, %v2518
        %v2529 = vmul.f32 %v2467, %v2520
        %v2530 = vmul.f32 %v2472, %v2522
        %v2531 = vld [vmem:[#allocation5] sm:$0xff]
        %v2532 = vld [vmem:[#allocation5 + $0x8] sm:$0xff]
        %v2533 = vld [vmem:[#allocation5 + $0x10] sm:$0xff]
        %v2534 = vld [vmem:[#allocation5 + $0x18] sm:$0xff]
        %v2535 = vld [vmem:[#allocation5 + $0x20] sm:$0xff]
        %v2536 = vld [vmem:[#allocation5 + $0x28] sm:$0xff]
        %v2537 = vld [vmem:[#allocation5 + $0x30] sm:$0xff]
        %v2538 = vld [vmem:[#allocation5 + $0x38] sm:$0xff]
        %v2539 = vld [vmem:[#allocation5 + $0x40] sm:$0xff]
        %v2540 = vld [vmem:[#allocation5 + $0x48] sm:$0xff]
        %v2541 = vld [vmem:[#allocation5 + $0x50] sm:$0xff]
        %v2542 = vld [vmem:[#allocation5 + $0x58] sm:$0xff]
        %v2543 = vld [vmem:[#allocation5 + $0x60] sm:$0xff]
        %v2544 = vld [vmem:[#allocation5 + $0x68] sm:$0xff]
        %v2545 = vld [vmem:[#allocation5 + $0x70] sm:$0xff]
        %v2546 = vld [vmem:[#allocation5 + $0x78] sm:$0xff]
        %v2547 = vld [vmem:[%s17] sm:$0x1]
        %v2549 = vlaneseq
        %v2550 = vshrl.u32 %v2549, 7
        %v2551 = vsub.s32 0, %v2550
        %v2552 = vrot.slane %v2547, %v2551
        %2554 = vmatprep.subr.mxu0 0.0
        %2555 = vmatpush1.msra.mxu0 %v2531
        %2556 = vmatprep.subr.mxu0 0.0
        %2557 = vmatpush1.msra.mxu0 %v2532
        %2558 = vmatprep.subr.mxu0 0.0
        %2559 = vmatpush1.msra.mxu0 %v2533
        %2560 = vmatprep.subr.mxu0 0.0
        %2561 = vmatpush1.msra.mxu0 %v2534
        %2562 = vmatprep.subr.mxu0 0.0
        %2563 = vmatpush1.msra.mxu0 %v2535
        %2564 = vmatprep.subr.mxu0 0.0
        %2565 = vmatpush1.msra.mxu0 %v2536
        %2566 = vmatprep.subr.mxu0 0.0
        %2567 = vmatpush1.msra.mxu0 %v2537
        %2568 = vmatprep.subr.mxu0 0.0
        %2569 = vmatpush1.msra.mxu0 %v2538
        %2570 = vmatprep.subr.mxu0 0.0
        %2571 = vmatpush1.msra.mxu0 %v2539
        %2572 = vmatprep.subr.mxu0 0.0
        %2573 = vmatpush1.msra.mxu0 %v2540
        %2574 = vmatprep.subr.mxu0 0.0
        %2575 = vmatpush1.msra.mxu0 %v2541
        %2576 = vmatprep.subr.mxu0 0.0
        %2577 = vmatpush1.msra.mxu0 %v2542
        %2578 = vmatprep.subr.mxu0 0.0
        %2579 = vmatpush1.msra.mxu0 %v2543
        %2580 = vmatprep.subr.mxu0 0.0
        %2581 = vmatpush1.msra.mxu0 %v2544
        %2582 = vmatprep.subr.mxu0 0.0
        %2583 = vmatpush1.msra.mxu0 %v2545
        %2584 = vmatprep.subr.mxu0 0.0
        %2585 = vmatpush1.msra.mxu0 %v2546
        %2586 = vmatprep.subr.mxu0 0.0
        %2587 = vmatpush1.msra.mxu0 0.0
        %2588 = vmatprep.subr.mxu0 0.0
        %2589 = vmatpush1.msra.mxu0 0.0
        %2590 = vmatprep.subr.mxu0 0.0
        %2591 = vmatpush1.msra.mxu0 0.0
        %2592 = vmatprep.subr.mxu0 0.0
        %2593 = vmatpush1.msra.mxu0 0.0
        %2594 = vmatprep.subr.mxu0 0.0
        %2595 = vmatpush1.msra.mxu0 0.0
        %2596 = vmatprep.subr.mxu0 0.0
        %2597 = vmatpush1.msra.mxu0 0.0
        %2598 = vmatprep.subr.mxu0 0.0
        %2599 = vmatpush1.msra.mxu0 0.0
        %2600 = vmatprep.subr.mxu0 0.0
        %2601 = vmatpush1.msra.mxu0 0.0
        %2602 = vmatprep.subr.mxu0 0.0
        %2603 = vmatpush1.msra.mxu0 0.0
        %2604 = vmatprep.subr.mxu0 0.0
        %2605 = vmatpush1.msra.mxu0 0.0
        %2606 = vmatprep.subr.mxu0 0.0
        %2607 = vmatpush1.msra.mxu0 0.0
        %2608 = vmatprep.subr.mxu0 0.0
        %2609 = vmatpush1.msra.mxu0 0.0
        %2610 = vmatprep.subr.mxu0 0.0
        %2611 = vmatpush1.msra.mxu0 0.0
        %2612 = vmatprep.subr.mxu0 0.0
        %2613 = vmatpush1.msra.mxu0 0.0
        %2614 = vmatprep.subr.mxu0 0.0
        %2615 = vmatpush1.msra.mxu0 0.0
        %2616 = vmatprep.subr.mxu0 0.0
        %2617 = vmatpush1.msra.mxu0 0.0
        %2618 = vmatprep.mubr.f32.mxu0 0.0
        %2619 = vmatmul.mubr.f32.gmra.mrb[0].mxu0 %v2523
        %v2620 = vpop.f32.mrb[0].mxu0
        %v2621 = vadd.f32 %v2552, %v2620
        %v2622 = vpop.f32.mrb[0].mxu0
        %2623 = vmatprep.mubr.f32.mxu0 0.0
        %2624 = vmatmul.mubr.f32.gmra.mrb[0].mxu0 %v2524
        %v2625 = vpop.f32.mrb[0].mxu0
        %v2626 = vadd.f32 %v2552, %v2625
        %v2627 = vpop.f32.mrb[0].mxu0
        %2628 = vmatprep.mubr.f32.mxu0 0.0
        %2629 = vmatmul.mubr.f32.gmra.mrb[0].mxu0 %v2525
        %v2630 = vpop.f32.mrb[0].mxu0
        %v2631 = vadd.f32 %v2552, %v2630
        %v2632 = vpop.f32.mrb[0].mxu0
        %2633 = vmatprep.mubr.f32.mxu0 0.0
        %2634 = vmatmul.mubr.f32.gmra.mrb[0].mxu0 %v2526
        %v2635 = vpop.f32.mrb[0].mxu0
        %v2636 = vadd.f32 %v2552, %v2635
        %v2637 = vpop.f32.mrb[0].mxu0
        %2638 = vmatprep.mubr.f32.mxu0 0.0
        %2639 = vmatmul.mubr.f32.gmra.mrb[0].mxu0 %v2527
        %v2640 = vpop.f32.mrb[0].mxu0
        %v2641 = vadd.f32 %v2552, %v2640
        %v2642 = vpop.f32.mrb[0].mxu0
        %2643 = vmatprep.mubr.f32.mxu0 0.0
        %2644 = vmatmul.mubr.f32.gmra.mrb[0].mxu0 %v2528
        %v2645 = vpop.f32.mrb[0].mxu0
        %v2646 = vadd.f32 %v2552, %v2645
        %v2647 = vpop.f32.mrb[0].mxu0
        %2648 = vmatprep.mubr.f32.mxu0 0.0
        %2649 = vmatmul.mubr.f32.gmra.mrb[0].mxu0 %v2529
        %v2650 = vpop.f32.mrb[0].mxu0
        %v2651 = vadd.f32 %v2552, %v2650
        %v2652 = vpop.f32.mrb[0].mxu0
        %2653 = vmatprep.mubr.f32.mxu0 0.0
        %2654 = vmatmul.mubr.f32.gmra.mrb[0].mxu0 %v2530
        %v2655 = vpop.f32.mrb[0].mxu0
        %v2656 = vadd.f32 %v2552, %v2655
        %v2657 = vpop.f32.mrb[0].mxu0
        %2658 = vdwg.mxu0
        %2659 = vst [vmem:[%s615] sm:$0xff] %v2621
        %2660 = vst [vmem:[%s615 + $0x8] sm:$0xff] %v2626
        %2661 = vst [vmem:[%s615 + $0x10] sm:$0xff] %v2631
        %2662 = vst [vmem:[%s615 + $0x18] sm:$0xff] %v2636
        %2663 = vst [vmem:[%s615 + $0x20] sm:$0xff] %v2641
        %2664 = vst [vmem:[%s615 + $0x28] sm:$0xff] %v2646
        %2665 = vst [vmem:[%s615 + $0x30] sm:$0xff] %v2651
        %2666 = vst [vmem:[%s615 + $0x38] sm:$0xff] %v2656
        %s2667 = sand.u32 %s430, 1
        %s2668 = scalar_lea.sflag [#allocation4], %s2667
        %s2669 = sand.u32 %s430, 1
        %s2670 = smul.addr %s2669, 64
        %s2671 = scalar_lea.vmem [#allocation7], %s2670
        // Predicated region
        $region101: #{tpu_custom_call.1} parent=91 // pred_check
          %p2672 = pneg %p440
        $region102: #{tpu_custom_call.1} parent=91 // pred_check_branch
          %2674 = sbr.rel (%p2672) target = $region104
        $region103: #{tpu_custom_call.1} parent=91 // pred_region
          %s2675 = smul.u32 8, %s34
          %s2677 = ssub.s32 1024, 1024
          %2678 = vsyncadd %s2668, %s2677
          %s2679 = smul.addr %s2675, 128
          %s2680 = scalar_lea.hbm %s18, %s2679
          %s2681 = sshll.u32 %s2671, 4
          %s2682 = int_to_ptr.vmem [resolvable:$true] %s2681
          %2687 = dma.vmem_to_hbm [thread:$0]  %s2682, 1024, %s2680, %s2668, 128, 128, 8
        $region104: #{tpu_custom_call.1} parent=91 // pred_fallthru
          _
      $region92: #{tpu_custom_call.1} parent=5 // pred_fallthru
        _
      %p2688 = scmp.le.s32.totalorder 2, %s29
      // Predicated region
      $region105: #{tpu_custom_call.1} parent=5 // pred_check
        %p2689 = pneg %p2688
      $region106: #{tpu_custom_call.1} parent=5 // pred_check_branch
        %2691 = sbr.rel (%p2689) target = $region108
      $region107: #{tpu_custom_call.1} parent=5 // pred_region
        %s2692 = ssub.s32 %s29, 2
        // Predicated region
        $region109: #{tpu_custom_call.1} parent=107 // pred_check
          %p2693 = pneg %p446
        $region110: #{tpu_custom_call.1} parent=107 // pred_check_branch
          %2695 = sbr.rel (%p2693) target = $region112
        $region111: #{tpu_custom_call.1} parent=107 // pred_region
          %s2696 = sand.u32 %s431, 1
          %s2697 = scalar_lea.sflag [#allocation4], %s2696
          %s2698 = sand.u32 %s431, 1
          %s2699 = smul.addr %s2698, 64
          %s2700 = scalar_lea.vmem [#allocation7], %s2699
          %2701 = dma.done %s2697, 1024
        $region112: #{tpu_custom_call.1} parent=107 // pred_fallthru
          _
      $region108: #{tpu_custom_call.1} parent=5 // pred_fallthru
        _
    $region6: #{tpu_custom_call.1} parent=1 // loop_footer
      %s33 = sadd.s32 1, %s29
    $region7: #{tpu_custom_call.1} parent=1 // loop_footer_branch
      %28 = sbr.rel target = $region3
    $region8: #{tpu_custom_call.1} parent=1 // loop_exit
      _
    %2702 = vsyncpa [#allocation3], 1
    %s2703 = scalar_lea.sflag [#allocation3], 1
    %2704 = vsyncpa %s2703, 1
    %2705 = vsyncpa [#allocation6], 1
    %2706 = vsyncpa [#allocation4], 1
    %s2707 = scalar_lea.sflag [#allocation4], 1
    %2708 = vsyncpa %s2707, 1

</llo_original>
